<compile_context>
chip_gen: v5e
topology: v5e:2x2
jax: 0.10.0
libtpu: 0.0.40
codegen_flags: <defaults>
</compile_context>

<pallas_src>
import numpy as np
import jax
import jax.numpy as jnp
from jax import lax
from jax.experimental import pallas as pl
from jax.experimental.pallas import tpu as pltpu

W_SIZE = 11
HALF = W_SIZE // 2            # 5
SIGMA = 1.5
PAD = 8                       # zero padding per side (>= HALF; keeps halo a multiple of 8)
HALO = 2 * PAD                # extra input rows per row block
C1 = 0.01 ** 2
C2 = 0.03 ** 2
_MAX_TILE_ELEMS = 256 * 1024  # TR*WP cap -> ~16-24 MiB live per step (fits v7x 64 MiB VMEM)

# Deterministic Gaussian window (same formula as SSIMLoss.gaussian_window),
# baked in as static separable 1D weights.
_g = np.exp(-((np.arange(W_SIZE) - W_SIZE // 2) ** 2) / (2.0 * SIGMA ** 2))
_g = (_g / _g.sum()).astype(np.float32)
GAUSS = tuple(float(v) for v in _g)


def _round_up(a, b):
    return (a + b - 1) // b * b


def _make_kernel(H, W, TR, WP):
    """Build the per-(batch, row-block) SSIM kernel specialized to static sizes."""

    def hconv(t):
        # Horizontal 11-tap Gaussian conv in centered form via lane rotations.
        # g[HALF+d] == g[HALF-d], so one coefficient covers both rotations;
        # wrapped lanes only touch columns outside [PAD, PAD+W), masked later.
        acc0 = GAUSS[HALF] * t
        acc1 = 0.0
        for d in range(1, HALF + 1):
            tp = pltpu.roll(t, shift=WP - d, axis=1)   # t[:, j+d] (mod WP)
            tm = pltpu.roll(t, shift=d, axis=1)        # t[:, j-d] (mod WP)
            term = GAUSS[HALF + d] * (tp + tm)
            if d % 2:
                acc1 = acc1 + term
            else:
                acc0 = acc0 + term
        return acc0 + acc1

    def kernel(x_ref, y_ref, out_ref):
        rb = pl.program_id(1)

        # Fused vertical pass: accumulate all five Gaussian-weighted planes in
        # one sweep over the 11 taps (slices come straight from the VMEM refs).
        vx = vy = vxx = vyy = vxy = None
        for u in range(W_SIZE):
            r0 = PAD - HALF + u                     # static: 3 .. 13
            xs = x_ref[0, 0, r0:r0 + TR, :]
            ys = y_ref[0, 0, r0:r0 + TR, :]
            g = GAUSS[u]
            gx = g * xs
            gy = g * ys
            if u == 0:
                vx, vy = gx, gy
                vxx, vyy, vxy = gx * xs, gy * ys, gx * ys
            else:
                vx = vx + gx
                vy = vy + gy
                vxx = vxx + gx * xs
                vyy = vyy + gy * ys
                vxy = vxy + gx * ys

        mu1 = hconv(vx)
        mu2 = hconv(vy)
        ex2 = hconv(vxx)
        ey2 = hconv(vyy)
        exy = hconv(vxy)

        mu1_sq = mu1 * mu1
        mu2_sq = mu2 * mu2
        mu12 = mu1 * mu2
        s1 = ex2 - mu1_sq
        s2 = ey2 - mu2_sq
        s12 = exy - mu12

        num = (2.0 * mu12 + C1) * (2.0 * s12 + C2)
        den = (mu1_sq + mu2_sq + C1) * (s1 + s2 + C2)
        ssim = num / den                             # (TR, WP)

        # Mask padded columns and (last block) padded rows, reduce along
        # sublanes only; the cross-lane/global reduction happens in the wrapper.
        rows = lax.broadcasted_iota(jnp.int32, (TR, WP), 0) + rb * TR
        cols = lax.broadcasted_iota(jnp.int32, (TR, WP), 1)
        valid = (rows < H) & (cols >= PAD) & (cols < PAD + W)
        part = jnp.sum(jnp.where(valid, ssim, 0.0), axis=0, keepdims=True)  # (1, WP)
        out_ref[0, 0] = jnp.broadcast_to(part, (8, WP))

    return kernel


def ssim_loss(x, y, window_size=W_SIZE, tile_rows=None):
    """x, y: (N, 1, H, W) float32 (NCHW).  Returns scalar 1 - mean(ssim_map)."""
    assert window_size == W_SIZE
    N, C, H, W = x.shape
    assert C == 1, "SSIMLoss hard-codes channel=1"

    WP = _round_up(W + HALO, 128)                   # lane-aligned padded width
    if tile_rows is None:
        max_rows = max(8, ((_MAX_TILE_ELEMS // WP) // 8) * 8)
        TR = min(max_rows, _round_up(H, 8))
    else:
        TR = min(_round_up(tile_rows, 8), _round_up(H, 8))
    NB = -(-H // TR)                                # number of row blocks
    Hp = NB * TR
    TRH = TR + HALO

    def to_windows(a):
        plane = jnp.zeros((N, Hp + HALO, WP), jnp.float32)
        plane = plane.at[:, PAD:PAD + H, PAD:PAD + W].set(a[:, 0].astype(jnp.float32))
        ridx = (jnp.arange(NB) * TR)[:, None] + jnp.arange(TRH)[None, :]
        return plane[:, ridx, :]                    # (N, NB, TRH, WP) overlapping windows

    xw = to_windows(x)
    yw = to_windows(y)

    # 2 inputs x 2 pipeline buffers + output + elementwise temporaries, with headroom.
    vmem_limit = int(4 * (2 * 2 * TRH * WP + 2 * 8 * WP + 24 * TR * WP))
    vmem_limit = max(8 << 20, min(vmem_limit, 52 << 20))

    kernel = _make_kernel(H, W, TR, WP)
    out = pl.pallas_call(
        kernel,
        out_shape=jax.ShapeDtypeStruct((N, NB, 8, WP), jnp.float32),
        grid_spec=pltpu.PrefetchScalarGridSpec(
            num_scalar_prefetch=0,
            grid=(N, NB),
            in_specs=[
                pl.BlockSpec((1, 1, TRH, WP), lambda b, r: (b, r, 0, 0)),
                pl.BlockSpec((1, 1, TRH, WP), lambda b, r: (b, r, 0, 0)),
            ],
            out_specs=pl.BlockSpec((1, 1, 8, WP), lambda b, r: (b, r, 0, 0)),
        ),
        compiler_params=pltpu.CompilerParams(
            dimension_semantics=("parallel", "parallel"),
            vmem_limit_bytes=vmem_limit),
    )(xw, yw)

    total = jnp.sum(out[:, :, 0, :])
    return 1.0 - total / (N * H * W)


def _ssim_loss_ref(x, y, window_size=W_SIZE):
    """Pure-JAX reference using lax conv (matches PyTorch F.conv2d semantics)."""
    p = window_size // 2
    win2d = jnp.asarray(np.outer(_g, _g), jnp.float32)[None, None]  # (1,1,11,11)

    def conv(a):
        return jax.lax.conv_general_dilated(
            a, win2d, window_strides=(1, 1), padding=[(p, p), (p, p)],
            dimension_numbers=("NCHW", "OIHW", "NCHW"),
            precision=jax.lax.Precision.HIGHEST)

    mu1, mu2 = conv(x), conv(y)
    mu1_sq, mu2_sq, mu1_mu2 = mu1 * mu1, mu2 * mu2, mu1 * mu2
    s1 = conv(x * x) - mu1_sq
    s2 = conv(y * y) - mu2_sq
    s12 = conv(x * y) - mu1_mu2
    ssim_map = ((2 * mu1_mu2 + C1) * (2 * s12 + C2)) / (
        (mu1_sq + mu2_sq + C1) * (s1 + s2 + C2))
    return 1.0 - jnp.mean(ssim_map)


if __name__ == "__main__":
    key = jax.random.PRNGKey(0)
    k1, k2, k3, k4 = jax.random.split(key, 4)

    # Case 1: shapes implied by the module (single-channel images).
    x = jax.random.uniform(k1, (2, 1, 16, 16), dtype=jnp.float32)
    y = jax.random.uniform(k2, (2, 1, 16, 16), dtype=jnp.float32)
    loss = ssim_loss(x, y)
    jax.block_until_ready(loss)
    np.testing.assert_allclose(np.asarray(loss), np.asarray(_ssim_loss_ref(x, y)),
                               rtol=1e-3, atol=1e-3)

    # Case 2: exercises multi-row-block tiling plus row/column masking.
    x2 = jax.random.uniform(k3, (1, 1, 40, 72), dtype=jnp.float32)
    y2 = jax.random.uniform(k4, (1, 1, 40, 72), dtype=jnp.float32)
    loss2 = ssim_loss(x2, y2, tile_rows=16)
    jax.block_until_ready(loss2)
    np.testing.assert_allclose(np.asarray(loss2), np.asarray(_ssim_loss_ref(x2, y2)),
                               rtol=1e-3, atol=1e-3)

    print("KERNEL_OK")
</pallas_src>

<mosaic_0001>
module attributes {stable_mosaic.version = 11 : i64} {
  func.func @kernel(%arg0: i32, %arg1: i32, %arg2: memref<1x1x32x128xf32, #tpu.memory_space<vmem>>, %arg3: memref<1x1x32x128xf32, #tpu.memory_space<vmem>>, %arg4: memref<1x1x8x128xf32, #tpu.memory_space<vmem>>) attributes {dimension_semantics = [#tpu.dimension_semantics<parallel>, #tpu.dimension_semantics<parallel>], iteration_bounds = array<i64: 2, 1>, scalar_prefetch = 0 : i64, scratch_operands = 0 : i64, tpu.core_type = #tpu.core_type<tc>, window_params = [{transform_indices = @transform_0, window_bounds = array<i64: 1, 1, 32, 128>}, {transform_indices = @transform_1, window_bounds = array<i64: 1, 1, 32, 128>}, {transform_indices = @transform_2, window_bounds = array<i64: 1, 1, 8, 128>}]} {
    %c0 = arith.constant 0 : index
    %c0_0 = arith.constant 0 : index
    %c3 = arith.constant 3 : index
    %c0_1 = arith.constant 0 : index
    %0 = vector.load %arg2[%c0, %c0_0, %c3, %c0_1] : memref<1x1x32x128xf32, #tpu.memory_space<vmem>>, vector<1x1x16x128xf32>
    %1 = vector.shape_cast %0 : vector<1x1x16x128xf32> to vector<16x128xf32>
    %c0_2 = arith.constant 0 : index
    %c0_3 = arith.constant 0 : index
    %c3_4 = arith.constant 3 : index
    %c0_5 = arith.constant 0 : index
    %2 = vector.load %arg3[%c0_2, %c0_3, %c3_4, %c0_5] : memref<1x1x32x128xf32, #tpu.memory_space<vmem>>, vector<1x1x16x128xf32>
    %3 = vector.shape_cast %2 : vector<1x1x16x128xf32> to vector<16x128xf32>
    %cst = arith.constant 0.00102838012 : f32
    %4 = vector.broadcast %cst : f32 to vector<16x128xf32>
    %5 = arith.mulf %4, %1 : vector<16x128xf32>
    %cst_6 = arith.constant 0.00102838012 : f32
    %6 = vector.broadcast %cst_6 : f32 to vector<16x128xf32>
    %7 = arith.mulf %6, %3 : vector<16x128xf32>
    %8 = arith.mulf %5, %1 : vector<16x128xf32>
    %9 = arith.mulf %7, %3 : vector<16x128xf32>
    %10 = arith.mulf %5, %3 : vector<16x128xf32>
    %c0_7 = arith.constant 0 : index
    %c0_8 = arith.constant 0 : index
    %c4 = arith.constant 4 : index
    %c0_9 = arith.constant 0 : index
    %11 = vector.load %arg2[%c0_7, %c0_8, %c4, %c0_9] : memref<1x1x32x128xf32, #tpu.memory_space<vmem>>, vector<1x1x16x128xf32>
    %12 = vector.shape_cast %11 : vector<1x1x16x128xf32> to vector<16x128xf32>
    %c0_10 = arith.constant 0 : index
    %c0_11 = arith.constant 0 : index
    %c4_12 = arith.constant 4 : index
    %c0_13 = arith.constant 0 : index
    %13 = vector.load %arg3[%c0_10, %c0_11, %c4_12, %c0_13] : memref<1x1x32x128xf32, #tpu.memory_space<vmem>>, vector<1x1x16x128xf32>
    %14 = vector.shape_cast %13 : vector<1x1x16x128xf32> to vector<16x128xf32>
    %cst_14 = arith.constant 0.00759875821 : f32
    %15 = vector.broadcast %cst_14 : f32 to vector<16x128xf32>
    %16 = arith.mulf %15, %12 : vector<16x128xf32>
    %cst_15 = arith.constant 0.00759875821 : f32
    %17 = vector.broadcast %cst_15 : f32 to vector<16x128xf32>
    %18 = arith.mulf %17, %14 : vector<16x128xf32>
    %19 = arith.addf %5, %16 : vector<16x128xf32>
    %20 = arith.addf %7, %18 : vector<16x128xf32>
    %21 = arith.mulf %16, %12 : vector<16x128xf32>
    %22 = arith.addf %8, %21 : vector<16x128xf32>
    %23 = arith.mulf %18, %14 : vector<16x128xf32>
    %24 = arith.addf %9, %23 : vector<16x128xf32>
    %25 = arith.mulf %16, %14 : vector<16x128xf32>
    %26 = arith.addf %10, %25 : vector<16x128xf32>
    %c0_16 = arith.constant 0 : index
    %c0_17 = arith.constant 0 : index
    %c5 = arith.constant 5 : index
    %c0_18 = arith.constant 0 : index
    %27 = vector.load %arg2[%c0_16, %c0_17, %c5, %c0_18] : memref<1x1x32x128xf32, #tpu.memory_space<vmem>>, vector<1x1x16x128xf32>
    %28 = vector.shape_cast %27 : vector<1x1x16x128xf32> to vector<16x128xf32>
    %c0_19 = arith.constant 0 : index
    %c0_20 = arith.constant 0 : index
    %c5_21 = arith.constant 5 : index
    %c0_22 = arith.constant 0 : index
    %29 = vector.load %arg3[%c0_19, %c0_20, %c5_21, %c0_22] : memref<1x1x32x128xf32, #tpu.memory_space<vmem>>, vector<1x1x16x128xf32>
    %30 = vector.shape_cast %29 : vector<1x1x16x128xf32> to vector<16x128xf32>
    %cst_23 = arith.constant 0.0360007733 : f32
    %31 = vector.broadcast %cst_23 : f32 to vector<16x128xf32>
    %32 = arith.mulf %31, %28 : vector<16x128xf32>
    %cst_24 = arith.constant 0.0360007733 : f32
    %33 = vector.broadcast %cst_24 : f32 to vector<16x128xf32>
    %34 = arith.mulf %33, %30 : vector<16x128xf32>
    %35 = arith.addf %19, %32 : vector<16x128xf32>
    %36 = arith.addf %20, %34 : vector<16x128xf32>
    %37 = arith.mulf %32, %28 : vector<16x128xf32>
    %38 = arith.addf %22, %37 : vector<16x128xf32>
    %39 = arith.mulf %34, %30 : vector<16x128xf32>
    %40 = arith.addf %24, %39 : vector<16x128xf32>
    %41 = arith.mulf %32, %30 : vector<16x128xf32>
    %42 = arith.addf %26, %41 : vector<16x128xf32>
    %c0_25 = arith.constant 0 : index
    %c0_26 = arith.constant 0 : index
    %c6 = arith.constant 6 : index
    %c0_27 = arith.constant 0 : index
    %43 = vector.load %arg2[%c0_25, %c0_26, %c6, %c0_27] : memref<1x1x32x128xf32, #tpu.memory_space<vmem>>, vector<1x1x16x128xf32>
    %44 = vector.shape_cast %43 : vector<1x1x16x128xf32> to vector<16x128xf32>
    %c0_28 = arith.constant 0 : index
    %c0_29 = arith.constant 0 : index
    %c6_30 = arith.constant 6 : index
    %c0_31 = arith.constant 0 : index
    %45 = vector.load %arg3[%c0_28, %c0_29, %c6_30, %c0_31] : memref<1x1x32x128xf32, #tpu.memory_space<vmem>>, vector<1x1x16x128xf32>
    %46 = vector.shape_cast %45 : vector<1x1x16x128xf32> to vector<16x128xf32>
    %cst_32 = arith.constant 0.109360687 : f32
    %47 = vector.broadcast %cst_32 : f32 to vector<16x128xf32>
    %48 = arith.mulf %47, %44 : vector<16x128xf32>
    %cst_33 = arith.constant 0.109360687 : f32
    %49 = vector.broadcast %cst_33 : f32 to vector<16x128xf32>
    %50 = arith.mulf %49, %46 : vector<16x128xf32>
    %51 = arith.addf %35, %48 : vector<16x128xf32>
    %52 = arith.addf %36, %50 : vector<16x128xf32>
    %53 = arith.mulf %48, %44 : vector<16x128xf32>
    %54 = arith.addf %38, %53 : vector<16x128xf32>
    %55 = arith.mulf %50, %46 : vector<16x128xf32>
    %56 = arith.addf %40, %55 : vector<16x128xf32>
    %57 = arith.mulf %48, %46 : vector<16x128xf32>
    %58 = arith.addf %42, %57 : vector<16x128xf32>
    %c0_34 = arith.constant 0 : index
    %c0_35 = arith.constant 0 : index
    %c7 = arith.constant 7 : index
    %c0_36 = arith.constant 0 : index
    %59 = vector.load %arg2[%c0_34, %c0_35, %c7, %c0_36] : memref<1x1x32x128xf32, #tpu.memory_space<vmem>>, vector<1x1x16x128xf32>
    %60 = vector.shape_cast %59 : vector<1x1x16x128xf32> to vector<16x128xf32>
    %c0_37 = arith.constant 0 : index
    %c0_38 = arith.constant 0 : index
    %c7_39 = arith.constant 7 : index
    %c0_40 = arith.constant 0 : index
    %61 = vector.load %arg3[%c0_37, %c0_38, %c7_39, %c0_40] : memref<1x1x32x128xf32, #tpu.memory_space<vmem>>, vector<1x1x16x128xf32>
    %62 = vector.shape_cast %61 : vector<1x1x16x128xf32> to vector<16x128xf32>
    %cst_41 = arith.constant 0.213005543 : f32
    %63 = vector.broadcast %cst_41 : f32 to vector<16x128xf32>
    %64 = arith.mulf %63, %60 : vector<16x128xf32>
    %cst_42 = arith.constant 0.213005543 : f32
    %65 = vector.broadcast %cst_42 : f32 to vector<16x128xf32>
    %66 = arith.mulf %65, %62 : vector<16x128xf32>
    %67 = arith.addf %51, %64 : vector<16x128xf32>
    %68 = arith.addf %52, %66 : vector<16x128xf32>
    %69 = arith.mulf %64, %60 : vector<16x128xf32>
    %70 = arith.addf %54, %69 : vector<16x128xf32>
    %71 = arith.mulf %66, %62 : vector<16x128xf32>
    %72 = arith.addf %56, %71 : vector<16x128xf32>
    %73 = arith.mulf %64, %62 : vector<16x128xf32>
    %74 = arith.addf %58, %73 : vector<16x128xf32>
    %c0_43 = arith.constant 0 : index
    %c0_44 = arith.constant 0 : index
    %c8 = arith.constant 8 : index
    %c0_45 = arith.constant 0 : index
    %75 = vector.load %arg2[%c0_43, %c0_44, %c8, %c0_45] : memref<1x1x32x128xf32, #tpu.memory_space<vmem>>, vector<1x1x16x128xf32>
    %76 = vector.shape_cast %75 : vector<1x1x16x128xf32> to vector<16x128xf32>
    %c0_46 = arith.constant 0 : index
    %c0_47 = arith.constant 0 : index
    %c8_48 = arith.constant 8 : index
    %c0_49 = arith.constant 0 : index
    %77 = vector.load %arg3[%c0_46, %c0_47, %c8_48, %c0_49] : memref<1x1x32x128xf32, #tpu.memory_space<vmem>>, vector<1x1x16x128xf32>
    %78 = vector.shape_cast %77 : vector<1x1x16x128xf32> to vector<16x128xf32>
    %cst_50 = arith.constant 0.266011715 : f32
    %79 = vector.broadcast %cst_50 : f32 to vector<16x128xf32>
    %80 = arith.mulf %79, %76 : vector<16x128xf32>
    %cst_51 = arith.constant 0.266011715 : f32
    %81 = vector.broadcast %cst_51 : f32 to vector<16x128xf32>
    %82 = arith.mulf %81, %78 : vector<16x128xf32>
    %83 = arith.addf %67, %80 : vector<16x128xf32>
    %84 = arith.addf %68, %82 : vector<16x128xf32>
    %85 = arith.mulf %80, %76 : vector<16x128xf32>
    %86 = arith.addf %70, %85 : vector<16x128xf32>
    %87 = arith.mulf %82, %78 : vector<16x128xf32>
    %88 = arith.addf %72, %87 : vector<16x128xf32>
    %89 = arith.mulf %80, %78 : vector<16x128xf32>
    %90 = arith.addf %74, %89 : vector<16x128xf32>
    %c0_52 = arith.constant 0 : index
    %c0_53 = arith.constant 0 : index
    %c9 = arith.constant 9 : index
    %c0_54 = arith.constant 0 : index
    %91 = vector.load %arg2[%c0_52, %c0_53, %c9, %c0_54] : memref<1x1x32x128xf32, #tpu.memory_space<vmem>>, vector<1x1x16x128xf32>
    %92 = vector.shape_cast %91 : vector<1x1x16x128xf32> to vector<16x128xf32>
    %c0_55 = arith.constant 0 : index
    %c0_56 = arith.constant 0 : index
    %c9_57 = arith.constant 9 : index
    %c0_58 = arith.constant 0 : index
    %93 = vector.load %arg3[%c0_55, %c0_56, %c9_57, %c0_58] : memref<1x1x32x128xf32, #tpu.memory_space<vmem>>, vector<1x1x16x128xf32>
    %94 = vector.shape_cast %93 : vector<1x1x16x128xf32> to vector<16x128xf32>
    %cst_59 = arith.constant 0.213005543 : f32
    %95 = vector.broadcast %cst_59 : f32 to vector<16x128xf32>
    %96 = arith.mulf %95, %92 : vector<16x128xf32>
    %cst_60 = arith.constant 0.213005543 : f32
    %97 = vector.broadcast %cst_60 : f32 to vector<16x128xf32>
    %98 = arith.mulf %97, %94 : vector<16x128xf32>
    %99 = arith.addf %83, %96 : vector<16x128xf32>
    %100 = arith.addf %84, %98 : vector<16x128xf32>
    %101 = arith.mulf %96, %92 : vector<16x128xf32>
    %102 = arith.addf %86, %101 : vector<16x128xf32>
    %103 = arith.mulf %98, %94 : vector<16x128xf32>
    %104 = arith.addf %88, %103 : vector<16x128xf32>
    %105 = arith.mulf %96, %94 : vector<16x128xf32>
    %106 = arith.addf %90, %105 : vector<16x128xf32>
    %c0_61 = arith.constant 0 : index
    %c0_62 = arith.constant 0 : index
    %c10 = arith.constant 10 : index
    %c0_63 = arith.constant 0 : index
    %107 = vector.load %arg2[%c0_61, %c0_62, %c10, %c0_63] : memref<1x1x32x128xf32, #tpu.memory_space<vmem>>, vector<1x1x16x128xf32>
    %108 = vector.shape_cast %107 : vector<1x1x16x128xf32> to vector<16x128xf32>
    %c0_64 = arith.constant 0 : index
    %c0_65 = arith.constant 0 : index
    %c10_66 = arith.constant 10 : index
    %c0_67 = arith.constant 0 : index
    %109 = vector.load %arg3[%c0_64, %c0_65, %c10_66, %c0_67] : memref<1x1x32x128xf32, #tpu.memory_space<vmem>>, vector<1x1x16x128xf32>
    %110 = vector.shape_cast %109 : vector<1x1x16x128xf32> to vector<16x128xf32>
    %cst_68 = arith.constant 0.109360687 : f32
    %111 = vector.broadcast %cst_68 : f32 to vector<16x128xf32>
    %112 = arith.mulf %111, %108 : vector<16x128xf32>
    %cst_69 = arith.constant 0.109360687 : f32
    %113 = vector.broadcast %cst_69 : f32 to vector<16x128xf32>
    %114 = arith.mulf %113, %110 : vector<16x128xf32>
    %115 = arith.addf %99, %112 : vector<16x128xf32>
    %116 = arith.addf %100, %114 : vector<16x128xf32>
    %117 = arith.mulf %112, %108 : vector<16x128xf32>
    %118 = arith.addf %102, %117 : vector<16x128xf32>
    %119 = arith.mulf %114, %110 : vector<16x128xf32>
    %120 = arith.addf %104, %119 : vector<16x128xf32>
    %121 = arith.mulf %112, %110 : vector<16x128xf32>
    %122 = arith.addf %106, %121 : vector<16x128xf32>
    %c0_70 = arith.constant 0 : index
    %c0_71 = arith.constant 0 : index
    %c11 = arith.constant 11 : index
    %c0_72 = arith.constant 0 : index
    %123 = vector.load %arg2[%c0_70, %c0_71, %c11, %c0_72] : memref<1x1x32x128xf32, #tpu.memory_space<vmem>>, vector<1x1x16x128xf32>
    %124 = vector.shape_cast %123 : vector<1x1x16x128xf32> to vector<16x128xf32>
    %c0_73 = arith.constant 0 : index
    %c0_74 = arith.constant 0 : index
    %c11_75 = arith.constant 11 : index
    %c0_76 = arith.constant 0 : index
    %125 = vector.load %arg3[%c0_73, %c0_74, %c11_75, %c0_76] : memref<1x1x32x128xf32, #tpu.memory_space<vmem>>, vector<1x1x16x128xf32>
    %126 = vector.shape_cast %125 : vector<1x1x16x128xf32> to vector<16x128xf32>
    %cst_77 = arith.constant 0.0360007733 : f32
    %127 = vector.broadcast %cst_77 : f32 to vector<16x128xf32>
    %128 = arith.mulf %127, %124 : vector<16x128xf32>
    %cst_78 = arith.constant 0.0360007733 : f32
    %129 = vector.broadcast %cst_78 : f32 to vector<16x128xf32>
    %130 = arith.mulf %129, %126 : vector<16x128xf32>
    %131 = arith.addf %115, %128 : vector<16x128xf32>
    %132 = arith.addf %116, %130 : vector<16x128xf32>
    %133 = arith.mulf %128, %124 : vector<16x128xf32>
    %134 = arith.addf %118, %133 : vector<16x128xf32>
    %135 = arith.mulf %130, %126 : vector<16x128xf32>
    %136 = arith.addf %120, %135 : vector<16x128xf32>
    %137 = arith.mulf %128, %126 : vector<16x128xf32>
    %138 = arith.addf %122, %137 : vector<16x128xf32>
    %c0_79 = arith.constant 0 : index
    %c0_80 = arith.constant 0 : index
    %c12 = arith.constant 12 : index
    %c0_81 = arith.constant 0 : index
    %139 = vector.load %arg2[%c0_79, %c0_80, %c12, %c0_81] : memref<1x1x32x128xf32, #tpu.memory_space<vmem>>, vector<1x1x16x128xf32>
    %140 = vector.shape_cast %139 : vector<1x1x16x128xf32> to vector<16x128xf32>
    %c0_82 = arith.constant 0 : index
    %c0_83 = arith.constant 0 : index
    %c12_84 = arith.constant 12 : index
    %c0_85 = arith.constant 0 : index
    %141 = vector.load %arg3[%c0_82, %c0_83, %c12_84, %c0_85] : memref<1x1x32x128xf32, #tpu.memory_space<vmem>>, vector<1x1x16x128xf32>
    %142 = vector.shape_cast %141 : vector<1x1x16x128xf32> to vector<16x128xf32>
    %cst_86 = arith.constant 0.00759875821 : f32
    %143 = vector.broadcast %cst_86 : f32 to vector<16x128xf32>
    %144 = arith.mulf %143, %140 : vector<16x128xf32>
    %cst_87 = arith.constant 0.00759875821 : f32
    %145 = vector.broadcast %cst_87 : f32 to vector<16x128xf32>
    %146 = arith.mulf %145, %142 : vector<16x128xf32>
    %147 = arith.addf %131, %144 : vector<16x128xf32>
    %148 = arith.addf %132, %146 : vector<16x128xf32>
    %149 = arith.mulf %144, %140 : vector<16x128xf32>
    %150 = arith.addf %134, %149 : vector<16x128xf32>
    %151 = arith.mulf %146, %142 : vector<16x128xf32>
    %152 = arith.addf %136, %151 : vector<16x128xf32>
    %153 = arith.mulf %144, %142 : vector<16x128xf32>
    %154 = arith.addf %138, %153 : vector<16x128xf32>
    %c0_88 = arith.constant 0 : index
    %c0_89 = arith.constant 0 : index
    %c13 = arith.constant 13 : index
    %c0_90 = arith.constant 0 : index
    %155 = vector.load %arg2[%c0_88, %c0_89, %c13, %c0_90] : memref<1x1x32x128xf32, #tpu.memory_space<vmem>>, vector<1x1x16x128xf32>
    %156 = vector.shape_cast %155 : vector<1x1x16x128xf32> to vector<16x128xf32>
    %c0_91 = arith.constant 0 : index
    %c0_92 = arith.constant 0 : index
    %c13_93 = arith.constant 13 : index
    %c0_94 = arith.constant 0 : index
    %157 = vector.load %arg3[%c0_91, %c0_92, %c13_93, %c0_94] : memref<1x1x32x128xf32, #tpu.memory_space<vmem>>, vector<1x1x16x128xf32>
    %158 = vector.shape_cast %157 : vector<1x1x16x128xf32> to vector<16x128xf32>
    %cst_95 = arith.constant 0.00102838012 : f32
    %159 = vector.broadcast %cst_95 : f32 to vector<16x128xf32>
    %160 = arith.mulf %159, %156 : vector<16x128xf32>
    %cst_96 = arith.constant 0.00102838012 : f32
    %161 = vector.broadcast %cst_96 : f32 to vector<16x128xf32>
    %162 = arith.mulf %161, %158 : vector<16x128xf32>
    %163 = arith.addf %147, %160 : vector<16x128xf32>
    %164 = arith.addf %148, %162 : vector<16x128xf32>
    %165 = arith.mulf %160, %156 : vector<16x128xf32>
    %166 = arith.addf %150, %165 : vector<16x128xf32>
    %167 = arith.mulf %162, %158 : vector<16x128xf32>
    %168 = arith.addf %152, %167 : vector<16x128xf32>
    %169 = arith.mulf %160, %158 : vector<16x128xf32>
    %170 = arith.addf %154, %169 : vector<16x128xf32>
    %cst_97 = arith.constant 0.266011715 : f32
    %171 = vector.broadcast %cst_97 : f32 to vector<16x128xf32>
    %172 = arith.mulf %171, %163 : vector<16x128xf32>
    %c127_i32 = arith.constant 127 : i32
    %173 = tpu.dynamic_rotate %163 by %c127_i32 dim 1 : vector<16x128xf32>, i32 -> vector<16x128xf32>
    %c1_i32 = arith.constant 1 : i32
    %174 = tpu.dynamic_rotate %163 by %c1_i32 dim 1 : vector<16x128xf32>, i32 -> vector<16x128xf32>
    %175 = arith.addf %173, %174 : vector<16x128xf32>
    %cst_98 = arith.constant 0.213005543 : f32
    %176 = vector.broadcast %cst_98 : f32 to vector<16x128xf32>
    %177 = arith.mulf %176, %175 : vector<16x128xf32>
    %cst_99 = arith.constant 0.000000e+00 : f32
    %178 = vector.broadcast %cst_99 : f32 to vector<16x128xf32>
    %179 = arith.addf %178, %177 : vector<16x128xf32>
    %c126_i32 = arith.constant 126 : i32
    %180 = tpu.dynamic_rotate %163 by %c126_i32 dim 1 : vector<16x128xf32>, i32 -> vector<16x128xf32>
    %c2_i32 = arith.constant 2 : i32
    %181 = tpu.dynamic_rotate %163 by %c2_i32 dim 1 : vector<16x128xf32>, i32 -> vector<16x128xf32>
    %182 = arith.addf %180, %181 : vector<16x128xf32>
    %cst_100 = arith.constant 0.109360687 : f32
    %183 = vector.broadcast %cst_100 : f32 to vector<16x128xf32>
    %184 = arith.mulf %183, %182 : vector<16x128xf32>
    %185 = arith.addf %172, %184 : vector<16x128xf32>
    %c125_i32 = arith.constant 125 : i32
    %186 = tpu.dynamic_rotate %163 by %c125_i32 dim 1 : vector<16x128xf32>, i32 -> vector<16x128xf32>
    %c3_i32 = arith.constant 3 : i32
    %187 = tpu.dynamic_rotate %163 by %c3_i32 dim 1 : vector<16x128xf32>, i32 -> vector<16x128xf32>
    %188 = arith.addf %186, %187 : vector<16x128xf32>
    %cst_101 = arith.constant 0.0360007733 : f32
    %189 = vector.broadcast %cst_101 : f32 to vector<16x128xf32>
    %190 = arith.mulf %189, %188 : vector<16x128xf32>
    %191 = arith.addf %179, %190 : vector<16x128xf32>
    %c124_i32 = arith.constant 124 : i32
    %192 = tpu.dynamic_rotate %163 by %c124_i32 dim 1 : vector<16x128xf32>, i32 -> vector<16x128xf32>
    %c4_i32 = arith.constant 4 : i32
    %193 = tpu.dynamic_rotate %163 by %c4_i32 dim 1 : vector<16x128xf32>, i32 -> vector<16x128xf32>
    %194 = arith.addf %192, %193 : vector<16x128xf32>
    %cst_102 = arith.constant 0.00759875821 : f32
    %195 = vector.broadcast %cst_102 : f32 to vector<16x128xf32>
    %196 = arith.mulf %195, %194 : vector<16x128xf32>
    %197 = arith.addf %185, %196 : vector<16x128xf32>
    %c123_i32 = arith.constant 123 : i32
    %198 = tpu.dynamic_rotate %163 by %c123_i32 dim 1 : vector<16x128xf32>, i32 -> vector<16x128xf32>
    %c5_i32 = arith.constant 5 : i32
    %199 = tpu.dynamic_rotate %163 by %c5_i32 dim 1 : vector<16x128xf32>, i32 -> vector<16x128xf32>
    %200 = arith.addf %198, %199 : vector<16x128xf32>
    %cst_103 = arith.constant 0.00102838012 : f32
    %201 = vector.broadcast %cst_103 : f32 to vector<16x128xf32>
    %202 = arith.mulf %201, %200 : vector<16x128xf32>
    %203 = arith.addf %191, %202 : vector<16x128xf32>
    %204 = arith.addf %197, %203 : vector<16x128xf32>
    %cst_104 = arith.constant 0.266011715 : f32
    %205 = vector.broadcast %cst_104 : f32 to vector<16x128xf32>
    %206 = arith.mulf %205, %164 : vector<16x128xf32>
    %c127_i32_105 = arith.constant 127 : i32
    %207 = tpu.dynamic_rotate %164 by %c127_i32_105 dim 1 : vector<16x128xf32>, i32 -> vector<16x128xf32>
    %c1_i32_106 = arith.constant 1 : i32
    %208 = tpu.dynamic_rotate %164 by %c1_i32_106 dim 1 : vector<16x128xf32>, i32 -> vector<16x128xf32>
    %209 = arith.addf %207, %208 : vector<16x128xf32>
    %cst_107 = arith.constant 0.213005543 : f32
    %210 = vector.broadcast %cst_107 : f32 to vector<16x128xf32>
    %211 = arith.mulf %210, %209 : vector<16x128xf32>
    %cst_108 = arith.constant 0.000000e+00 : f32
    %212 = vector.broadcast %cst_108 : f32 to vector<16x128xf32>
    %213 = arith.addf %212, %211 : vector<16x128xf32>
    %c126_i32_109 = arith.constant 126 : i32
    %214 = tpu.dynamic_rotate %164 by %c126_i32_109 dim 1 : vector<16x128xf32>, i32 -> vector<16x128xf32>
    %c2_i32_110 = arith.constant 2 : i32
    %215 = tpu.dynamic_rotate %164 by %c2_i32_110 dim 1 : vector<16x128xf32>, i32 -> vector<16x128xf32>
    %216 = arith.addf %214, %215 : vector<16x128xf32>
    %cst_111 = arith.constant 0.109360687 : f32
    %217 = vector.broadcast %cst_111 : f32 to vector<16x128xf32>
    %218 = arith.mulf %217, %216 : vector<16x128xf32>
    %219 = arith.addf %206, %218 : vector<16x128xf32>
    %c125_i32_112 = arith.constant 125 : i32
    %220 = tpu.dynamic_rotate %164 by %c125_i32_112 dim 1 : vector<16x128xf32>, i32 -> vector<16x128xf32>
    %c3_i32_113 = arith.constant 3 : i32
    %221 = tpu.dynamic_rotate %164 by %c3_i32_113 dim 1 : vector<16x128xf32>, i32 -> vector<16x128xf32>
    %222 = arith.addf %220, %221 : vector<16x128xf32>
    %cst_114 = arith.constant 0.0360007733 : f32
    %223 = vector.broadcast %cst_114 : f32 to vector<16x128xf32>
    %224 = arith.mulf %223, %222 : vector<16x128xf32>
    %225 = arith.addf %213, %224 : vector<16x128xf32>
    %c124_i32_115 = arith.constant 124 : i32
    %226 = tpu.dynamic_rotate %164 by %c124_i32_115 dim 1 : vector<16x128xf32>, i32 -> vector<16x128xf32>
    %c4_i32_116 = arith.constant 4 : i32
    %227 = tpu.dynamic_rotate %164 by %c4_i32_116 dim 1 : vector<16x128xf32>, i32 -> vector<16x128xf32>
    %228 = arith.addf %226, %227 : vector<16x128xf32>
    %cst_117 = arith.constant 0.00759875821 : f32
    %229 = vector.broadcast %cst_117 : f32 to vector<16x128xf32>
    %230 = arith.mulf %229, %228 : vector<16x128xf32>
    %231 = arith.addf %219, %230 : vector<16x128xf32>
    %c123_i32_118 = arith.constant 123 : i32
    %232 = tpu.dynamic_rotate %164 by %c123_i32_118 dim 1 : vector<16x128xf32>, i32 -> vector<16x128xf32>
    %c5_i32_119 = arith.constant 5 : i32
    %233 = tpu.dynamic_rotate %164 by %c5_i32_119 dim 1 : vector<16x128xf32>, i32 -> vector<16x128xf32>
    %234 = arith.addf %232, %233 : vector<16x128xf32>
    %cst_120 = arith.constant 0.00102838012 : f32
    %235 = vector.broadcast %cst_120 : f32 to vector<16x128xf32>
    %236 = arith.mulf %235, %234 : vector<16x128xf32>
    %237 = arith.addf %225, %236 : vector<16x128xf32>
    %238 = arith.addf %231, %237 : vector<16x128xf32>
    %cst_121 = arith.constant 0.266011715 : f32
    %239 = vector.broadcast %cst_121 : f32 to vector<16x128xf32>
    %240 = arith.mulf %239, %166 : vector<16x128xf32>
    %c127_i32_122 = arith.constant 127 : i32
    %241 = tpu.dynamic_rotate %166 by %c127_i32_122 dim 1 : vector<16x128xf32>, i32 -> vector<16x128xf32>
    %c1_i32_123 = arith.constant 1 : i32
    %242 = tpu.dynamic_rotate %166 by %c1_i32_123 dim 1 : vector<16x128xf32>, i32 -> vector<16x128xf32>
    %243 = arith.addf %241, %242 : vector<16x128xf32>
    %cst_124 = arith.constant 0.213005543 : f32
    %244 = vector.broadcast %cst_124 : f32 to vector<16x128xf32>
    %245 = arith.mulf %244, %243 : vector<16x128xf32>
    %cst_125 = arith.constant 0.000000e+00 : f32
    %246 = vector.broadcast %cst_125 : f32 to vector<16x128xf32>
    %247 = arith.addf %246, %245 : vector<16x128xf32>
    %c126_i32_126 = arith.constant 126 : i32
    %248 = tpu.dynamic_rotate %166 by %c126_i32_126 dim 1 : vector<16x128xf32>, i32 -> vector<16x128xf32>
    %c2_i32_127 = arith.constant 2 : i32
    %249 = tpu.dynamic_rotate %166 by %c2_i32_127 dim 1 : vector<16x128xf32>, i32 -> vector<16x128xf32>
    %250 = arith.addf %248, %249 : vector<16x128xf32>
    %cst_128 = arith.constant 0.109360687 : f32
    %251 = vector.broadcast %cst_128 : f32 to vector<16x128xf32>
    %252 = arith.mulf %251, %250 : vector<16x128xf32>
    %253 = arith.addf %240, %252 : vector<16x128xf32>
    %c125_i32_129 = arith.constant 125 : i32
    %254 = tpu.dynamic_rotate %166 by %c125_i32_129 dim 1 : vector<16x128xf32>, i32 -> vector<16x128xf32>
    %c3_i32_130 = arith.constant 3 : i32
    %255 = tpu.dynamic_rotate %166 by %c3_i32_130 dim 1 : vector<16x128xf32>, i32 -> vector<16x128xf32>
    %256 = arith.addf %254, %255 : vector<16x128xf32>
    %cst_131 = arith.constant 0.0360007733 : f32
    %257 = vector.broadcast %cst_131 : f32 to vector<16x128xf32>
    %258 = arith.mulf %257, %256 : vector<16x128xf32>
    %259 = arith.addf %247, %258 : vector<16x128xf32>
    %c124_i32_132 = arith.constant 124 : i32
    %260 = tpu.dynamic_rotate %166 by %c124_i32_132 dim 1 : vector<16x128xf32>, i32 -> vector<16x128xf32>
    %c4_i32_133 = arith.constant 4 : i32
    %261 = tpu.dynamic_rotate %166 by %c4_i32_133 dim 1 : vector<16x128xf32>, i32 -> vector<16x128xf32>
    %262 = arith.addf %260, %261 : vector<16x128xf32>
    %cst_134 = arith.constant 0.00759875821 : f32
    %263 = vector.broadcast %cst_134 : f32 to vector<16x128xf32>
    %264 = arith.mulf %263, %262 : vector<16x128xf32>
    %265 = arith.addf %253, %264 : vector<16x128xf32>
    %c123_i32_135 = arith.constant 123 : i32
    %266 = tpu.dynamic_rotate %166 by %c123_i32_135 dim 1 : vector<16x128xf32>, i32 -> vector<16x128xf32>
    %c5_i32_136 = arith.constant 5 : i32
    %267 = tpu.dynamic_rotate %166 by %c5_i32_136 dim 1 : vector<16x128xf32>, i32 -> vector<16x128xf32>
    %268 = arith.addf %266, %267 : vector<16x128xf32>
    %cst_137 = arith.constant 0.00102838012 : f32
    %269 = vector.broadcast %cst_137 : f32 to vector<16x128xf32>
    %270 = arith.mulf %269, %268 : vector<16x128xf32>
    %271 = arith.addf %259, %270 : vector<16x128xf32>
    %272 = arith.addf %265, %271 : vector<16x128xf32>
    %cst_138 = arith.constant 0.266011715 : f32
    %273 = vector.broadcast %cst_138 : f32 to vector<16x128xf32>
    %274 = arith.mulf %273, %168 : vector<16x128xf32>
    %c127_i32_139 = arith.constant 127 : i32
    %275 = tpu.dynamic_rotate %168 by %c127_i32_139 dim 1 : vector<16x128xf32>, i32 -> vector<16x128xf32>
    %c1_i32_140 = arith.constant 1 : i32
    %276 = tpu.dynamic_rotate %168 by %c1_i32_140 dim 1 : vector<16x128xf32>, i32 -> vector<16x128xf32>
    %277 = arith.addf %275, %276 : vector<16x128xf32>
    %cst_141 = arith.constant 0.213005543 : f32
    %278 = vector.broadcast %cst_141 : f32 to vector<16x128xf32>
    %279 = arith.mulf %278, %277 : vector<16x128xf32>
    %cst_142 = arith.constant 0.000000e+00 : f32
    %280 = vector.broadcast %cst_142 : f32 to vector<16x128xf32>
    %281 = arith.addf %280, %279 : vector<16x128xf32>
    %c126_i32_143 = arith.constant 126 : i32
    %282 = tpu.dynamic_rotate %168 by %c126_i32_143 dim 1 : vector<16x128xf32>, i32 -> vector<16x128xf32>
    %c2_i32_144 = arith.constant 2 : i32
    %283 = tpu.dynamic_rotate %168 by %c2_i32_144 dim 1 : vector<16x128xf32>, i32 -> vector<16x128xf32>
    %284 = arith.addf %282, %283 : vector<16x128xf32>
    %cst_145 = arith.constant 0.109360687 : f32
    %285 = vector.broadcast %cst_145 : f32 to vector<16x128xf32>
    %286 = arith.mulf %285, %284 : vector<16x128xf32>
    %287 = arith.addf %274, %286 : vector<16x128xf32>
    %c125_i32_146 = arith.constant 125 : i32
    %288 = tpu.dynamic_rotate %168 by %c125_i32_146 dim 1 : vector<16x128xf32>, i32 -> vector<16x128xf32>
    %c3_i32_147 = arith.constant 3 : i32
    %289 = tpu.dynamic_rotate %168 by %c3_i32_147 dim 1 : vector<16x128xf32>, i32 -> vector<16x128xf32>
    %290 = arith.addf %288, %289 : vector<16x128xf32>
    %cst_148 = arith.constant 0.0360007733 : f32
    %291 = vector.broadcast %cst_148 : f32 to vector<16x128xf32>
    %292 = arith.mulf %291, %290 : vector<16x128xf32>
    %293 = arith.addf %281, %292 : vector<16x128xf32>
    %c124_i32_149 = arith.constant 124 : i32
    %294 = tpu.dynamic_rotate %168 by %c124_i32_149 dim 1 : vector<16x128xf32>, i32 -> vector<16x128xf32>
    %c4_i32_150 = arith.constant 4 : i32
    %295 = tpu.dynamic_rotate %168 by %c4_i32_150 dim 1 : vector<16x128xf32>, i32 -> vector<16x128xf32>
    %296 = arith.addf %294, %295 : vector<16x128xf32>
    %cst_151 = arith.constant 0.00759875821 : f32
    %297 = vector.broadcast %cst_151 : f32 to vector<16x128xf32>
    %298 = arith.mulf %297, %296 : vector<16x128xf32>
    %299 = arith.addf %287, %298 : vector<16x128xf32>
    %c123_i32_152 = arith.constant 123 : i32
    %300 = tpu.dynamic_rotate %168 by %c123_i32_152 dim 1 : vector<16x128xf32>, i32 -> vector<16x128xf32>
    %c5_i32_153 = arith.constant 5 : i32
    %301 = tpu.dynamic_rotate %168 by %c5_i32_153 dim 1 : vector<16x128xf32>, i32 -> vector<16x128xf32>
    %302 = arith.addf %300, %301 : vector<16x128xf32>
    %cst_154 = arith.constant 0.00102838012 : f32
    %303 = vector.broadcast %cst_154 : f32 to vector<16x128xf32>
    %304 = arith.mulf %303, %302 : vector<16x128xf32>
    %305 = arith.addf %293, %304 : vector<16x128xf32>
    %306 = arith.addf %299, %305 : vector<16x128xf32>
    %cst_155 = arith.constant 0.266011715 : f32
    %307 = vector.broadcast %cst_155 : f32 to vector<16x128xf32>
    %308 = arith.mulf %307, %170 : vector<16x128xf32>
    %c127_i32_156 = arith.constant 127 : i32
    %309 = tpu.dynamic_rotate %170 by %c127_i32_156 dim 1 : vector<16x128xf32>, i32 -> vector<16x128xf32>
    %c1_i32_157 = arith.constant 1 : i32
    %310 = tpu.dynamic_rotate %170 by %c1_i32_157 dim 1 : vector<16x128xf32>, i32 -> vector<16x128xf32>
    %311 = arith.addf %309, %310 : vector<16x128xf32>
    %cst_158 = arith.constant 0.213005543 : f32
    %312 = vector.broadcast %cst_158 : f32 to vector<16x128xf32>
    %313 = arith.mulf %312, %311 : vector<16x128xf32>
    %cst_159 = arith.constant 0.000000e+00 : f32
    %314 = vector.broadcast %cst_159 : f32 to vector<16x128xf32>
    %315 = arith.addf %314, %313 : vector<16x128xf32>
    %c126_i32_160 = arith.constant 126 : i32
    %316 = tpu.dynamic_rotate %170 by %c126_i32_160 dim 1 : vector<16x128xf32>, i32 -> vector<16x128xf32>
    %c2_i32_161 = arith.constant 2 : i32
    %317 = tpu.dynamic_rotate %170 by %c2_i32_161 dim 1 : vector<16x128xf32>, i32 -> vector<16x128xf32>
    %318 = arith.addf %316, %317 : vector<16x128xf32>
    %cst_162 = arith.constant 0.109360687 : f32
    %319 = vector.broadcast %cst_162 : f32 to vector<16x128xf32>
    %320 = arith.mulf %319, %318 : vector<16x128xf32>
    %321 = arith.addf %308, %320 : vector<16x128xf32>
    %c125_i32_163 = arith.constant 125 : i32
    %322 = tpu.dynamic_rotate %170 by %c125_i32_163 dim 1 : vector<16x128xf32>, i32 -> vector<16x128xf32>
    %c3_i32_164 = arith.constant 3 : i32
    %323 = tpu.dynamic_rotate %170 by %c3_i32_164 dim 1 : vector<16x128xf32>, i32 -> vector<16x128xf32>
    %324 = arith.addf %322, %323 : vector<16x128xf32>
    %cst_165 = arith.constant 0.0360007733 : f32
    %325 = vector.broadcast %cst_165 : f32 to vector<16x128xf32>
    %326 = arith.mulf %325, %324 : vector<16x128xf32>
    %327 = arith.addf %315, %326 : vector<16x128xf32>
    %c124_i32_166 = arith.constant 124 : i32
    %328 = tpu.dynamic_rotate %170 by %c124_i32_166 dim 1 : vector<16x128xf32>, i32 -> vector<16x128xf32>
    %c4_i32_167 = arith.constant 4 : i32
    %329 = tpu.dynamic_rotate %170 by %c4_i32_167 dim 1 : vector<16x128xf32>, i32 -> vector<16x128xf32>
    %330 = arith.addf %328, %329 : vector<16x128xf32>
    %cst_168 = arith.constant 0.00759875821 : f32
    %331 = vector.broadcast %cst_168 : f32 to vector<16x128xf32>
    %332 = arith.mulf %331, %330 : vector<16x128xf32>
    %333 = arith.addf %321, %332 : vector<16x128xf32>
    %c123_i32_169 = arith.constant 123 : i32
    %334 = tpu.dynamic_rotate %170 by %c123_i32_169 dim 1 : vector<16x128xf32>, i32 -> vector<16x128xf32>
    %c5_i32_170 = arith.constant 5 : i32
    %335 = tpu.dynamic_rotate %170 by %c5_i32_170 dim 1 : vector<16x128xf32>, i32 -> vector<16x128xf32>
    %336 = arith.addf %334, %335 : vector<16x128xf32>
    %cst_171 = arith.constant 0.00102838012 : f32
    %337 = vector.broadcast %cst_171 : f32 to vector<16x128xf32>
    %338 = arith.mulf %337, %336 : vector<16x128xf32>
    %339 = arith.addf %327, %338 : vector<16x128xf32>
    %340 = arith.addf %333, %339 : vector<16x128xf32>
    %341 = arith.mulf %204, %204 : vector<16x128xf32>
    %342 = arith.mulf %238, %238 : vector<16x128xf32>
    %343 = arith.mulf %204, %238 : vector<16x128xf32>
    %344 = arith.subf %272, %341 : vector<16x128xf32>
    %345 = arith.subf %306, %342 : vector<16x128xf32>
    %346 = arith.subf %340, %343 : vector<16x128xf32>
    %cst_172 = arith.constant 2.000000e+00 : f32
    %347 = vector.broadcast %cst_172 : f32 to vector<16x128xf32>
    %348 = arith.mulf %347, %343 : vector<16x128xf32>
    %cst_173 = arith.constant 9.99999974E-5 : f32
    %349 = vector.broadcast %cst_173 : f32 to vector<16x128xf32>
    %350 = arith.addf %348, %349 : vector<16x128xf32>
    %cst_174 = arith.constant 2.000000e+00 : f32
    %351 = vector.broadcast %cst_174 : f32 to vector<16x128xf32>
    %352 = arith.mulf %351, %346 : vector<16x128xf32>
    %cst_175 = arith.constant 8.99999984E-4 : f32
    %353 = vector.broadcast %cst_175 : f32 to vector<16x128xf32>
    %354 = arith.addf %352, %353 : vector<16x128xf32>
    %355 = arith.mulf %350, %354 : vector<16x128xf32>
    %356 = arith.addf %341, %342 : vector<16x128xf32>
    %cst_176 = arith.constant 9.99999974E-5 : f32
    %357 = vector.broadcast %cst_176 : f32 to vector<16x128xf32>
    %358 = arith.addf %356, %357 : vector<16x128xf32>
    %359 = arith.addf %344, %345 : vector<16x128xf32>
    %cst_177 = arith.constant 8.99999984E-4 : f32
    %360 = vector.broadcast %cst_177 : f32 to vector<16x128xf32>
    %361 = arith.addf %359, %360 : vector<16x128xf32>
    %362 = arith.mulf %358, %361 : vector<16x128xf32>
    %363 = arith.divf %355, %362 : vector<16x128xf32>
    %364 = tpu.iota {dimensions = array<i32: 0>} : vector<16x128xi32>
    %c16_i32 = arith.constant 16 : i32
    %365 = arith.muli %arg1, %c16_i32 : i32
    %366 = vector.broadcast %365 : i32 to vector<16x128xi32>
    %367 = arith.addi %364, %366 : vector<16x128xi32>
    %368 = tpu.iota {dimensions = array<i32: 1>} : vector<16x128xi32>
    %c16_i32_178 = arith.constant 16 : i32
    %369 = vector.broadcast %c16_i32_178 : i32 to vector<16x128xi32>
    %370 = arith.cmpi slt, %367, %369 : vector<16x128xi32>
    %c8_i32 = arith.constant 8 : i32
    %371 = vector.broadcast %c8_i32 : i32 to vector<16x128xi32>
    %372 = arith.cmpi sge, %368, %371 : vector<16x128xi32>
    %373 = arith.andi %370, %372 : vector<16x128xi1>
    %c24_i32 = arith.constant 24 : i32
    %374 = vector.broadcast %c24_i32 : i32 to vector<16x128xi32>
    %375 = arith.cmpi slt, %368, %374 : vector<16x128xi32>
    %376 = arith.andi %373, %375 : vector<16x128xi1>
    %cst_179 = arith.constant 0.000000e+00 : f32
    %377 = vector.broadcast %cst_179 : f32 to vector<16x128xf32>
    %378 = arith.select %376, %363, %377 : vector<16x128xi1>, vector<16x128xf32>
    %cst_180 = arith.constant dense<0.000000e+00> : vector<128xf32>
    %379 = vector.multi_reduction <add>, %378, %cst_180 [0] : vector<16x128xf32> to vector<128xf32>
    %380 = vector.shape_cast %379 : vector<128xf32> to vector<1x128xf32>
    %381 = vector.shape_cast %380 : vector<1x128xf32> to vector<1x128xf32>
    %382 = vector.broadcast %381 : vector<1x128xf32> to vector<8x128xf32>
    %c0_181 = arith.constant 0 : index
    %c0_182 = arith.constant 0 : index
    %c0_183 = arith.constant 0 : index
    %c0_184 = arith.constant 0 : index
    %383 = vector.load %arg4[%c0_181, %c0_182, %c0_183, %c0_184] : memref<1x1x8x128xf32, #tpu.memory_space<vmem>>, vector<1x1x8x128xf32>
    %384 = vector.shape_cast %383 : vector<1x1x8x128xf32> to vector<8x128xf32>
    %385 = vector.shape_cast %382 : vector<8x128xf32> to vector<1x1x8x128xf32>
    tpu.vector_store %arg4[%c0_181, %c0_182, %c0_183, %c0_184], %385 {strides = array<i32>} : memref<1x1x8x128xf32, #tpu.memory_space<vmem>>, vector<1x1x8x128xf32>,
    return
  }
  func.func @transform_0(%arg0: i32, %arg1: i32) -> (i32, i32, i32, i32) {
    %c0_i32 = arith.constant 0 : i32
    %c0_i32_0 = arith.constant 0 : i32
    %c0_i32_1 = arith.constant 0 : i32
    return %arg0, %arg1, %c0_i32, %c0_i32_0 : i32, i32, i32, i32
  }
  func.func @transform_1(%arg0: i32, %arg1: i32) -> (i32, i32, i32, i32) {
    %c0_i32 = arith.constant 0 : i32
    %c0_i32_0 = arith.constant 0 : i32
    %c0_i32_1 = arith.constant 0 : i32
    return %arg0, %arg1, %c0_i32, %c0_i32_0 : i32, i32, i32, i32
  }
  func.func @transform_2(%arg0: i32, %arg1: i32) -> (i32, i32, i32, i32) {
    %c0_i32 = arith.constant 0 : i32
    %c0_i32_0 = arith.constant 0 : i32
    %c0_i32_1 = arith.constant 0 : i32
    return %arg0, %arg1, %c0_i32, %c0_i32_0 : i32, i32, i32, i32
  }
}

</mosaic_0001>

<llo_original>
// kernel: tpu_custom_call.1
$region0: #{tpu_custom_call.1}
  #allocation0 [shape = 'u32[]', space=smem, size = 0x4, offset = 0x4, fixed_abs, tag = 'smem constant byte address 0x4 - core index']
  #allocation1 [shape = 'u32[72,128]{1,0:T(1,128)}', space=vmem, size = 0x9000, scoped, tag = 'internal scratch']
  %s0 = inlined_call_operand.hbm [shape: f32[2,1,32,128], index: 0, kind: input, shape index: {}]
  %s1 = inlined_call_operand.hbm [shape: f32[2,1,32,128], index: 1, kind: input, shape index: {}]
  %s2 = inlined_call_operand.hbm [shape: f32[2,1,8,128], index: 2, kind: output, shape index: {}]
  %s3 = sld [smem:[#allocation0]]
  $region49: #{tpu_custom_call.1} parent=0
    _
  %s5 = ssub.s32 1, %s3
  %s6 = scalar_select 0, %s5, %s3
  $region1: #{tpu_custom_call.1} parent=0
    #allocation2 [shape = 'u8[32768]{0}', space=vmem, size = 0x8000, scoped, tag = 'input window, operand 0']
    #allocation3 [shape = 's32[2]{0}', space=sflag, size = 0x8, scoped, tag = 'scoped memory for tpu_custom_call.1']
    #allocation4 [shape = 's32[2]{0}', space=sflag, size = 0x8, scoped, tag = 'scoped memory for tpu_custom_call.1']
    #allocation5 [shape = 'u8[32768]{0}', space=vmem, size = 0x8000, scoped, tag = 'input window, operand 1']
    #allocation6 [shape = 's32[2]{0}', space=sflag, size = 0x8, scoped, tag = 'scoped memory for tpu_custom_call.1']
    #allocation7 [shape = 'u8[8192]{0}', space=vmem, size = 0x2000, scoped, tag = 'output window, operand 0']
    %7 = vsyncpa [#allocation3], 0
    %s8 = scalar_lea.sflag [#allocation3], 1
    %9 = vsyncpa %s8, 0
    %10 = vsyncpa [#allocation6], 0
    %s11 = scalar_lea.sflag [#allocation6], 1
    %12 = vsyncpa %s11, 0
    %13 = vsyncpa [#allocation4], 0
    %s14 = scalar_lea.sflag [#allocation4], 1
    %15 = vsyncpa %s14, 0
    loop: start=0, step=1, limit=4
    $region2: #{tpu_custom_call.1} parent=1 // loop_pre_header
      _
    $region3: #{tpu_custom_call.1} parent=1 // loop_header
      %s17 = sphi 0, %s21
      %p18 = scmp.ge.s32.totalorder %s17, 4
      %s24 = sphi 0, %s36
      %s25 = sphi 0, %s32
      %s26 = sphi 0, %s24
      %s27 = sphi 0, %s25
      %s28 = sphi 0, %s26
      %s29 = sphi 0, %s27
      %s41 = sphi 0, %s43
      %s44 = sphi 0, %s41
      %s45 = sphi 0, %s44
      %s61 = sphi 0, %s45
      %s69 = sphi 0, %s71
      %s72 = sphi 0, %s69
      %s73 = sphi 0, %s72
      %s89 = sphi 0, %s73
      %s97 = sphi 0, %s99
      %s100 = sphi 0, %s97
      %s101 = sphi 0, %s100
      %s117 = sphi 0, %s101
    $region4: #{tpu_custom_call.1} parent=1 // loop_header_branch
      %20 = sbr.rel (%p18) target = $region8
    $region5: #{tpu_custom_call.1} parent=1 // loop_body
      %s22 = ssub.s32 %s17, 1
      %s23 = ssub.s32 %s17, 2
      %s30 = sadd.s32 1, %s25
      %p31 = scmp.ge.s32.totalorder %s30, 1
      %s32 = scalar_select %p31, 0, %s30
      %s33 = sadd.s32 1, %s24
      %s34 = scalar_select %p31, %s33, %s24
      %p35 = scmp.ge.s32.totalorder %s34, 2
      %s36 = scalar_select %p35, 0, %s34
      %s37 = ssub.s32 %s24, %s36
      %s38 = ssub.s32 %s25, %s32
      %s39 = sor.u32 %s37, %s38
      %p40 = scmp.eq.s32.totalorder %s39, 0
      %s42 = sadd.s32 %s41, 1
      %s43 = scalar_select %p40, %s41, %s42
      %p46 = pneg %p40
      %p47 = scmp.eq.s32.totalorder %s17, 1
      %p48 = por %p46, %p47
      %p49 = scmp.ne.s32.totalorder %s41, %s44
      %p50 = scmp.eq.s32.totalorder %s17, 0
      %p51 = por %p49, %p50
      %p52 = scmp.ne.s32.totalorder %s41, %s44
      %p53 = scmp.eq.s32.totalorder %s22, 1
      %p54 = por %p52, %p53
      %p55 = scmp.ne.s32.totalorder %s44, %s45
      %p56 = scmp.eq.s32.totalorder %s22, 0
      %p57 = por %p55, %p56
      %p58 = scmp.ne.s32.totalorder %s44, %s45
      %p59 = scmp.eq.s32.totalorder %s23, 1
      %p60 = por %p58, %p59
      %p62 = scmp.ne.s32.totalorder %s45, %s61
      %p63 = scmp.eq.s32.totalorder %s23, 0
      %p64 = por %p62, %p63
      %s65 = ssub.s32 %s24, %s36
      %s66 = ssub.s32 %s25, %s32
      %s67 = sor.u32 %s65, %s66
      %p68 = scmp.eq.s32.totalorder %s67, 0
      %s70 = sadd.s32 %s69, 1
      %s71 = scalar_select %p68, %s69, %s70
      %p74 = pneg %p68
      %p75 = scmp.eq.s32.totalorder %s17, 1
      %p76 = por %p74, %p75
      %p77 = scmp.ne.s32.totalorder %s69, %s72
      %p78 = scmp.eq.s32.totalorder %s17, 0
      %p79 = por %p77, %p78
      %p80 = scmp.ne.s32.totalorder %s69, %s72
      %p81 = scmp.eq.s32.totalorder %s22, 1
      %p82 = por %p80, %p81
      %p83 = scmp.ne.s32.totalorder %s72, %s73
      %p84 = scmp.eq.s32.totalorder %s22, 0
      %p85 = por %p83, %p84
      %p86 = scmp.ne.s32.totalorder %s72, %s73
      %p87 = scmp.eq.s32.totalorder %s23, 1
      %p88 = por %p86, %p87
      %p90 = scmp.ne.s32.totalorder %s73, %s89
      %p91 = scmp.eq.s32.totalorder %s23, 0
      %p92 = por %p90, %p91
      %s93 = ssub.s32 %s24, %s36
      %s94 = ssub.s32 %s25, %s32
      %s95 = sor.u32 %s93, %s94
      %p96 = scmp.eq.s32.totalorder %s95, 0
      %s98 = sadd.s32 %s97, 1
      %s99 = scalar_select %p96, %s97, %s98
      %p102 = pneg %p96
      %p103 = scmp.eq.s32.totalorder %s17, 1
      %p104 = por %p102, %p103
      %p105 = scmp.ne.s32.totalorder %s97, %s100
      %p106 = scmp.eq.s32.totalorder %s17, 0
      %p107 = por %p105, %p106
      %p108 = scmp.ne.s32.totalorder %s97, %s100
      %p109 = scmp.eq.s32.totalorder %s22, 1
      %p110 = por %p108, %p109
      %p111 = scmp.ne.s32.totalorder %s100, %s101
      %p112 = scmp.eq.s32.totalorder %s22, 0
      %p113 = por %p111, %p112
      %p114 = scmp.ne.s32.totalorder %s100, %s101
      %p115 = scmp.eq.s32.totalorder %s23, 1
      %p116 = por %p114, %p115
      %p118 = scmp.ne.s32.totalorder %s101, %s117
      %p119 = scmp.eq.s32.totalorder %s23, 0
      %p120 = por %p118, %p119
      %p121 = scmp.le.s32.totalorder 1, %s17
      %p122 = scmp.lt.s32.totalorder %s17, 3
      %p123 = pnand %p121, %p122
      %p124 = pneg %p123
      // Predicated region
      $region9: #{tpu_custom_call.1} parent=5 // pred_check
        _
      $region10: #{tpu_custom_call.1} parent=5 // pred_check_branch
        %126 = sbr.rel (%p123) target = $region12
      $region11: #{tpu_custom_call.1} parent=5 // pred_region
        %s127 = ssub.s32 %s17, 1
      $region12: #{tpu_custom_call.1} parent=5 // pred_fallthru
        _
      %p128 = scmp.lt.s32.totalorder %s17, 2
      // Predicated region
      $region13: #{tpu_custom_call.1} parent=5 // pred_check
        %p129 = pneg %p128
      $region14: #{tpu_custom_call.1} parent=5 // pred_check_branch
        %131 = sbr.rel (%p129) target = $region16
      $region15: #{tpu_custom_call.1} parent=5 // pred_region
        // Predicated region
        $region17: #{tpu_custom_call.1} parent=15 // pred_check
          %p132 = pneg %p51
        $region18: #{tpu_custom_call.1} parent=15 // pred_check_branch
          %134 = sbr.rel (%p132) target = $region20
        $region19: #{tpu_custom_call.1} parent=15 // pred_region
          %s135 = sand.u32 %s41, 1
          %s136 = scalar_lea.sflag [#allocation3], %s135
          %s137 = sand.u32 %s41, 1
          %s138 = smul.addr %s137, 32
          %s139 = scalar_lea.vmem [#allocation2], %s138
          %141 = vsyncadd %s136, 0
          %s142 = smul.addr %s25, 4
          %s143 = smul.addr %s24, 4
          %s144 = sadd.s32 %s142, %s143
          %s145 = smul.addr %s144, 8
          %s146 = scalar_lea.hbm %s0, %s145
          %s147 = sshll.u32 %s146, 4
          %s148 = int_to_ptr.hbm [resolvable:$true] %s147
          %s149 = sshll.u32 %s139, 4
          %s150 = int_to_ptr.vmem [resolvable:$true] %s149
          %155 = dma.hbm_to_vmem [thread:$0]  %s148, 512, %s150, %s136, 128, 128, 8
        $region20: #{tpu_custom_call.1} parent=15 // pred_fallthru
          _
        // Predicated region
        $region21: #{tpu_custom_call.1} parent=15 // pred_check
          %p156 = pneg %p79
        $region22: #{tpu_custom_call.1} parent=15 // pred_check_branch
          %158 = sbr.rel (%p156) target = $region24
        $region23: #{tpu_custom_call.1} parent=15 // pred_region
          %s159 = sand.u32 %s69, 1
          %s160 = scalar_lea.sflag [#allocation6], %s159
          %s161 = sand.u32 %s69, 1
          %s162 = smul.addr %s161, 32
          %s163 = scalar_lea.vmem [#allocation5], %s162
          %165 = vsyncadd %s160, 0
          %s166 = smul.addr %s25, 4
          %s167 = smul.addr %s24, 4
          %s168 = sadd.s32 %s166, %s167
          %s169 = smul.addr %s168, 8
          %s170 = scalar_lea.hbm %s1, %s169
          %s171 = sshll.u32 %s170, 4
          %s172 = int_to_ptr.hbm [resolvable:$true] %s171
          %s173 = sshll.u32 %s163, 4
          %s174 = int_to_ptr.vmem [resolvable:$true] %s173
          %179 = dma.hbm_to_vmem [thread:$0]  %s172, 512, %s174, %s160, 128, 128, 8
        $region24: #{tpu_custom_call.1} parent=15 // pred_fallthru
          _
      $region16: #{tpu_custom_call.1} parent=5 // pred_fallthru
        _
      %p180 = scmp.le.s32.totalorder 1, %s17
      %p181 = scmp.lt.s32.totalorder %s17, 3
      %p182 = pnand %p180, %p181
      %p183 = pneg %p182
      // Predicated region
      $region25: #{tpu_custom_call.1} parent=5 // pred_check
        _
      $region26: #{tpu_custom_call.1} parent=5 // pred_check_branch
        %185 = sbr.rel (%p182) target = $region28
      $region27: #{tpu_custom_call.1} parent=5 // pred_region
        %s186 = ssub.s32 %s17, 1
        %s187 = sand.u32 %s44, 1
        %s188 = scalar_lea.sflag [#allocation3], %s187
        %s189 = sand.u32 %s44, 1
        %s190 = smul.addr %s189, 32
        %s191 = scalar_lea.vmem [#allocation2], %s190
        // Predicated region
        $region29: #{tpu_custom_call.1} parent=27 // pred_check
          %p192 = pneg %p57
        $region30: #{tpu_custom_call.1} parent=27 // pred_check_branch
          %194 = sbr.rel (%p192) target = $region32
        $region31: #{tpu_custom_call.1} parent=27 // pred_region
          %196 = dma.done %s188, 512
        $region32: #{tpu_custom_call.1} parent=27 // pred_fallthru
          _
        %s197 = sand.u32 %s72, 1
        %s198 = scalar_lea.sflag [#allocation6], %s197
        %s199 = sand.u32 %s72, 1
        %s200 = smul.addr %s199, 32
        %s201 = scalar_lea.vmem [#allocation5], %s200
        // Predicated region
        $region33: #{tpu_custom_call.1} parent=27 // pred_check
          %p202 = pneg %p85
        $region34: #{tpu_custom_call.1} parent=27 // pred_check_branch
          %204 = sbr.rel (%p202) target = $region36
        $region35: #{tpu_custom_call.1} parent=27 // pred_region
          %206 = dma.done %s198, 512
        $region36: #{tpu_custom_call.1} parent=27 // pred_fallthru
          _
        %s207 = sand.u32 %s44, 1
        %s208 = scalar_lea.sflag [#allocation3], %s207
        %s209 = sand.u32 %s44, 1
        %s210 = smul.addr %s209, 32
        %s211 = scalar_lea.vmem [#allocation2], %s210
        %p212 = pneg %p57
        %p213 = pneg %p54
        %s214 = sand.u32 %s72, 1
        %s215 = scalar_lea.sflag [#allocation6], %s214
        %s216 = sand.u32 %s72, 1
        %s217 = smul.addr %s216, 32
        %s218 = scalar_lea.vmem [#allocation5], %s217
        %p219 = pneg %p85
        %p220 = pneg %p82
        %p221 = pneg %p113
        %p222 = pneg %p110
        %s223 = sand.u32 %s100, 1
        %s224 = scalar_lea.sflag [#allocation4], %s223
        %s225 = sand.u32 %s100, 1
        %s226 = smul.addr %s225, 8
        %s227 = scalar_lea.vmem [#allocation7], %s226
        %v228 = vld [vmem:[%s191 + $0x3] sm:$0xff]
        %v229 = vld [vmem:[%s191 + $0xb] sm:$0xff]
        %v230 = vld [vmem:[%s201 + $0x3] sm:$0xff]
        %v231 = vld [vmem:[%s201 + $0xb] sm:$0xff]
        %v232 = vmul.f32 %v228, 0.0010283801
        %v233 = vmul.f32 %v229, 0.0010283801
        %v234 = vmul.f32 %v230, 0.0010283801
        %v235 = vmul.f32 %v231, 0.0010283801
        %v236 = vmul.f32 %v232, %v228
        %v237 = vmul.f32 %v233, %v229
        %v238 = vmul.f32 %v234, %v230
        %v239 = vmul.f32 %v235, %v231
        %v240 = vmul.f32 %v232, %v230
        %v241 = vmul.f32 %v233, %v231
        %v242 = vld [vmem:[%s191 + $0x4] sm:$0xff]
        %v243 = vld [vmem:[%s191 + $0xc] sm:$0xff]
        %v244 = vld [vmem:[%s201 + $0x4] sm:$0xff]
        %v245 = vld [vmem:[%s201 + $0xc] sm:$0xff]
        %v246 = vmul.f32 %v242, 0.007598758
        %v247 = vmul.f32 %v243, 0.007598758
        %v248 = vmul.f32 %v244, 0.007598758
        %v249 = vmul.f32 %v245, 0.007598758
        %v250 = vadd.f32 %v232, %v246
        %v251 = vadd.f32 %v233, %v247
        %v252 = vadd.f32 %v234, %v248
        %v253 = vadd.f32 %v235, %v249
        %v254 = vmul.f32 %v246, %v242
        %v255 = vmul.f32 %v247, %v243
        %v256 = vadd.f32 %v236, %v254
        %v257 = vadd.f32 %v237, %v255
        %v258 = vmul.f32 %v248, %v244
        %v259 = vmul.f32 %v249, %v245
        %v260 = vadd.f32 %v238, %v258
        %v261 = vadd.f32 %v239, %v259
        %v262 = vmul.f32 %v246, %v244
        %v263 = vmul.f32 %v247, %v245
        %v264 = vadd.f32 %v240, %v262
        %v265 = vadd.f32 %v241, %v263
        %v266 = vld [vmem:[%s191 + $0x5] sm:$0xff]
        %v267 = vld [vmem:[%s191 + $0xd] sm:$0xff]
        %v268 = vld [vmem:[%s201 + $0x5] sm:$0xff]
        %v269 = vld [vmem:[%s201 + $0xd] sm:$0xff]
        %v270 = vmul.f32 %v266, 0.036000773
        %v271 = vmul.f32 %v267, 0.036000773
        %v272 = vmul.f32 %v268, 0.036000773
        %v273 = vmul.f32 %v269, 0.036000773
        %v274 = vadd.f32 %v250, %v270
        %v275 = vadd.f32 %v251, %v271
        %v276 = vadd.f32 %v252, %v272
        %v277 = vadd.f32 %v253, %v273
        %v278 = vmul.f32 %v270, %v266
        %v279 = vmul.f32 %v271, %v267
        %v280 = vadd.f32 %v256, %v278
        %v281 = vadd.f32 %v257, %v279
        %v282 = vmul.f32 %v272, %v268
        %v283 = vmul.f32 %v273, %v269
        %v284 = vadd.f32 %v260, %v282
        %v285 = vadd.f32 %v261, %v283
        %v286 = vmul.f32 %v270, %v268
        %v287 = vmul.f32 %v271, %v269
        %v288 = vadd.f32 %v264, %v286
        %v289 = vadd.f32 %v265, %v287
        %v290 = vld [vmem:[%s191 + $0x6] sm:$0xff]
        %v291 = vld [vmem:[%s191 + $0xe] sm:$0xff]
        %v292 = vld [vmem:[%s201 + $0x6] sm:$0xff]
        %v293 = vld [vmem:[%s201 + $0xe] sm:$0xff]
        %v294 = vmul.f32 %v290, 0.10936069
        %v295 = vmul.f32 %v291, 0.10936069
        %v296 = vmul.f32 %v292, 0.10936069
        %v297 = vmul.f32 %v293, 0.10936069
        %v298 = vadd.f32 %v274, %v294
        %v299 = vadd.f32 %v275, %v295
        %v300 = vadd.f32 %v276, %v296
        %v301 = vadd.f32 %v277, %v297
        %v302 = vmul.f32 %v294, %v290
        %v303 = vmul.f32 %v295, %v291
        %v304 = vadd.f32 %v280, %v302
        %v305 = vadd.f32 %v281, %v303
        %v306 = vmul.f32 %v296, %v292
        %v307 = vmul.f32 %v297, %v293
        %v308 = vadd.f32 %v284, %v306
        %v309 = vadd.f32 %v285, %v307
        %v310 = vmul.f32 %v294, %v292
        %v311 = vmul.f32 %v295, %v293
        %v312 = vadd.f32 %v288, %v310
        %v313 = vadd.f32 %v289, %v311
        %v314 = vld [vmem:[%s191 + $0x7] sm:$0xff]
        %v315 = vld [vmem:[%s191 + $0xf] sm:$0xff]
        %v316 = vld [vmem:[%s201 + $0x7] sm:$0xff]
        %v317 = vld [vmem:[%s201 + $0xf] sm:$0xff]
        %v318 = vmul.f32 %v314, 0.21300554
        %v319 = vmul.f32 %v315, 0.21300554
        %v320 = vmul.f32 %v316, 0.21300554
        %v321 = vmul.f32 %v317, 0.21300554
        %v322 = vadd.f32 %v298, %v318
        %v323 = vadd.f32 %v299, %v319
        %v324 = vadd.f32 %v300, %v320
        %v325 = vadd.f32 %v301, %v321
        %v326 = vmul.f32 %v318, %v314
        %v327 = vmul.f32 %v319, %v315
        %v328 = vadd.f32 %v304, %v326
        %v329 = vadd.f32 %v305, %v327
        %v330 = vmul.f32 %v320, %v316
        %v331 = vmul.f32 %v321, %v317
        %v332 = vadd.f32 %v308, %v330
        %v333 = vadd.f32 %v309, %v331
        %v334 = vmul.f32 %v318, %v316
        %v335 = vmul.f32 %v319, %v317
        %v336 = vadd.f32 %v312, %v334
        %v337 = vadd.f32 %v313, %v335
        %v338 = vld [vmem:[%s191 + $0x8] sm:$0xff]
        %v339 = vld [vmem:[%s191 + $0x10] sm:$0xff]
        %v340 = vld [vmem:[%s201 + $0x8] sm:$0xff]
        %v341 = vld [vmem:[%s201 + $0x10] sm:$0xff]
        %v342 = vmul.f32 %v338, 0.26601171
        %v343 = vmul.f32 %v339, 0.26601171
        %v344 = vmul.f32 %v340, 0.26601171
        %v345 = vmul.f32 %v341, 0.26601171
        %v346 = vadd.f32 %v322, %v342
        %v347 = vadd.f32 %v323, %v343
        %v348 = vadd.f32 %v324, %v344
        %v349 = vadd.f32 %v325, %v345
        %v350 = vmul.f32 %v342, %v338
        %v351 = vmul.f32 %v343, %v339
        %v352 = vadd.f32 %v328, %v350
        %v353 = vadd.f32 %v329, %v351
        %v354 = vmul.f32 %v344, %v340
        %v355 = vmul.f32 %v345, %v341
        %v356 = vadd.f32 %v332, %v354
        %v357 = vadd.f32 %v333, %v355
        %v358 = vmul.f32 %v342, %v340
        %v359 = vmul.f32 %v343, %v341
        %v360 = vadd.f32 %v336, %v358
        %v361 = vadd.f32 %v337, %v359
        %v362 = vld [vmem:[%s191 + $0x9] sm:$0xff]
        %v363 = vld [vmem:[%s191 + $0x11] sm:$0xff]
        %v364 = vld [vmem:[%s201 + $0x9] sm:$0xff]
        %v365 = vld [vmem:[%s201 + $0x11] sm:$0xff]
        %v366 = vmul.f32 %v362, 0.21300554
        %v367 = vmul.f32 %v363, 0.21300554
        %v368 = vmul.f32 %v364, 0.21300554
        %v369 = vmul.f32 %v365, 0.21300554
        %v370 = vadd.f32 %v346, %v366
        %v371 = vadd.f32 %v347, %v367
        %v372 = vadd.f32 %v348, %v368
        %v373 = vadd.f32 %v349, %v369
        %v374 = vmul.f32 %v366, %v362
        %v375 = vmul.f32 %v367, %v363
        %v376 = vadd.f32 %v352, %v374
        %v377 = vadd.f32 %v353, %v375
        %v378 = vmul.f32 %v368, %v364
        %v379 = vmul.f32 %v369, %v365
        %v380 = vadd.f32 %v356, %v378
        %v381 = vadd.f32 %v357, %v379
        %v382 = vmul.f32 %v366, %v364
        %v383 = vmul.f32 %v367, %v365
        %v384 = vadd.f32 %v360, %v382
        %v385 = vadd.f32 %v361, %v383
        %v386 = vld [vmem:[%s191 + $0xa] sm:$0xff]
        %v387 = vld [vmem:[%s191 + $0x12] sm:$0xff]
        %v388 = vld [vmem:[%s201 + $0xa] sm:$0xff]
        %v389 = vld [vmem:[%s201 + $0x12] sm:$0xff]
        %v390 = vmul.f32 %v386, 0.10936069
        %v391 = vmul.f32 %v387, 0.10936069
        %v392 = vmul.f32 %v388, 0.10936069
        %v393 = vmul.f32 %v389, 0.10936069
        %v394 = vadd.f32 %v370, %v390
        %v395 = vadd.f32 %v371, %v391
        %v396 = vadd.f32 %v372, %v392
        %v397 = vadd.f32 %v373, %v393
        %v398 = vmul.f32 %v390, %v386
        %v399 = vmul.f32 %v391, %v387
        %v400 = vadd.f32 %v376, %v398
        %v401 = vadd.f32 %v377, %v399
        %v402 = vmul.f32 %v392, %v388
        %v403 = vmul.f32 %v393, %v389
        %v404 = vadd.f32 %v380, %v402
        %v405 = vadd.f32 %v381, %v403
        %v406 = vmul.f32 %v390, %v388
        %v407 = vmul.f32 %v391, %v389
        %v408 = vadd.f32 %v384, %v406
        %v409 = vadd.f32 %v385, %v407
        %v410 = vld [vmem:[%s191 + $0x13] sm:$0xff]
        %v411 = vld [vmem:[%s201 + $0x13] sm:$0xff]
        %v412 = vmul.f32 %v229, 0.036000773
        %v413 = vmul.f32 %v410, 0.036000773
        %v414 = vmul.f32 %v231, 0.036000773
        %v415 = vmul.f32 %v411, 0.036000773
        %v416 = vadd.f32 %v394, %v412
        %v417 = vadd.f32 %v395, %v413
        %v418 = vadd.f32 %v396, %v414
        %v419 = vadd.f32 %v397, %v415
        %v420 = vmul.f32 %v412, %v229
        %v421 = vmul.f32 %v413, %v410
        %v422 = vadd.f32 %v400, %v420
        %v423 = vadd.f32 %v401, %v421
        %v424 = vmul.f32 %v414, %v231
        %v425 = vmul.f32 %v415, %v411
        %v426 = vadd.f32 %v404, %v424
        %v427 = vadd.f32 %v405, %v425
        %v428 = vmul.f32 %v412, %v231
        %v429 = vmul.f32 %v413, %v411
        %v430 = vadd.f32 %v408, %v428
        %v431 = vadd.f32 %v409, %v429
        %v432 = vld [vmem:[%s191 + $0x14] sm:$0xff]
        %v433 = vld [vmem:[%s201 + $0x14] sm:$0xff]
        %v434 = vmul.f32 %v432, 0.007598758
        %v435 = vmul.f32 %v433, 0.007598758
        %v436 = vadd.f32 %v416, %v247
        %v437 = vadd.f32 %v417, %v434
        %v438 = vadd.f32 %v418, %v249
        %v439 = vadd.f32 %v419, %v435
        %v440 = vmul.f32 %v434, %v432
        %v441 = vadd.f32 %v422, %v255
        %v442 = vadd.f32 %v423, %v440
        %v443 = vmul.f32 %v435, %v433
        %v444 = vadd.f32 %v426, %v259
        %v445 = vadd.f32 %v427, %v443
        %v446 = vmul.f32 %v434, %v433
        %v447 = vadd.f32 %v430, %v263
        %v448 = vadd.f32 %v431, %v446
        %v449 = vld [vmem:[%s191 + $0x15] sm:$0xff]
        %v450 = vld [vmem:[%s201 + $0x15] sm:$0xff]
        %v451 = vmul.f32 %v267, 0.0010283801
        %v452 = vmul.f32 %v449, 0.0010283801
        %v453 = vmul.f32 %v269, 0.0010283801
        %v454 = vmul.f32 %v450, 0.0010283801
        %v455 = vadd.f32 %v436, %v451
        %v456 = vadd.f32 %v437, %v452
        %v457 = vadd.f32 %v438, %v453
        %v458 = vadd.f32 %v439, %v454
        %v459 = vmul.f32 %v451, %v267
        %v460 = vmul.f32 %v452, %v449
        %v461 = vadd.f32 %v441, %v459
        %v462 = vadd.f32 %v442, %v460
        %v463 = vmul.f32 %v453, %v269
        %v464 = vmul.f32 %v454, %v450
        %v465 = vadd.f32 %v444, %v463
        %v466 = vadd.f32 %v445, %v464
        %v467 = vmul.f32 %v451, %v269
        %v468 = vmul.f32 %v452, %v450
        %v469 = vadd.f32 %v447, %v467
        %v470 = vadd.f32 %v448, %v468
        %v471 = vmul.f32 %v455, 0.26601171
        %v472 = vmul.f32 %v456, 0.26601171
        %473 = vrot.lane.b32.xlu0 %v455, 127
        %v474 = vpop.permute.xlu0 %473
        %475 = vrot.lane.b32.xlu0 %v456, 127
        %v476 = vpop.permute.xlu0 %475
        %477 = vrot.lane.b32.xlu0 %v455, 1
        %v478 = vpop.permute.xlu0 %477
        %479 = vrot.lane.b32.xlu0 %v456, 1
        %v480 = vpop.permute.xlu0 %479
        %v481 = vadd.f32 %v474, %v478
        %v482 = vadd.f32 %v476, %v480
        %v483 = vmul.f32 %v481, 0.21300554
        %v484 = vmul.f32 %v482, 0.21300554
        %v485 = vadd.f32 %v483, 0.0
        %v486 = vadd.f32 %v484, 0.0
        %487 = vrot.lane.b32.xlu0 %v455, 126
        %v488 = vpop.permute.xlu0 %487
        %489 = vrot.lane.b32.xlu0 %v456, 126
        %v490 = vpop.permute.xlu0 %489
        %491 = vrot.lane.b32.xlu0 %v455, 2
        %v492 = vpop.permute.xlu0 %491
        %493 = vrot.lane.b32.xlu0 %v456, 2
        %v494 = vpop.permute.xlu0 %493
        %v495 = vadd.f32 %v488, %v492
        %v496 = vadd.f32 %v490, %v494
        %v497 = vmul.f32 %v495, 0.10936069
        %v498 = vmul.f32 %v496, 0.10936069
        %v499 = vadd.f32 %v471, %v497
        %v500 = vadd.f32 %v472, %v498
        %501 = vrot.lane.b32.xlu0 %v455, 125
        %v502 = vpop.permute.xlu0 %501
        %503 = vrot.lane.b32.xlu0 %v456, 125
        %v504 = vpop.permute.xlu0 %503
        %505 = vrot.lane.b32.xlu0 %v455, 3
        %v506 = vpop.permute.xlu0 %505
        %507 = vrot.lane.b32.xlu0 %v456, 3
        %v508 = vpop.permute.xlu0 %507
        %v509 = vadd.f32 %v502, %v506
        %v510 = vadd.f32 %v504, %v508
        %v511 = vmul.f32 %v509, 0.036000773
        %v512 = vmul.f32 %v510, 0.036000773
        %v513 = vadd.f32 %v485, %v511
        %v514 = vadd.f32 %v486, %v512
        %515 = vrot.lane.b32.xlu0 %v455, 124
        %v516 = vpop.permute.xlu0 %515
        %517 = vrot.lane.b32.xlu0 %v456, 124
        %v518 = vpop.permute.xlu0 %517
        %519 = vrot.lane.b32.xlu0 %v455, 4
        %v520 = vpop.permute.xlu0 %519
        %521 = vrot.lane.b32.xlu0 %v456, 4
        %v522 = vpop.permute.xlu0 %521
        %v523 = vadd.f32 %v516, %v520
        %v524 = vadd.f32 %v518, %v522
        %v525 = vmul.f32 %v523, 0.007598758
        %v526 = vmul.f32 %v524, 0.007598758
        %v527 = vadd.f32 %v499, %v525
        %v528 = vadd.f32 %v500, %v526
        %529 = vrot.lane.b32.xlu0 %v455, 123
        %v530 = vpop.permute.xlu0 %529
        %531 = vrot.lane.b32.xlu0 %v456, 123
        %v532 = vpop.permute.xlu0 %531
        %533 = vrot.lane.b32.xlu0 %v455, 5
        %v534 = vpop.permute.xlu0 %533
        %535 = vrot.lane.b32.xlu0 %v456, 5
        %v536 = vpop.permute.xlu0 %535
        %v537 = vadd.f32 %v530, %v534
        %v538 = vadd.f32 %v532, %v536
        %v539 = vmul.f32 %v537, 0.0010283801
        %v540 = vmul.f32 %v538, 0.0010283801
        %v541 = vadd.f32 %v513, %v539
        %v542 = vadd.f32 %v514, %v540
        %v543 = vadd.f32 %v527, %v541
        %v544 = vadd.f32 %v528, %v542
        %v545 = vmul.f32 %v457, 0.26601171
        %v546 = vmul.f32 %v458, 0.26601171
        %547 = vrot.lane.b32.xlu0 %v457, 127
        %v548 = vpop.permute.xlu0 %547
        %549 = vrot.lane.b32.xlu0 %v458, 127
        %v550 = vpop.permute.xlu0 %549
        %551 = vrot.lane.b32.xlu0 %v457, 1
        %v552 = vpop.permute.xlu0 %551
        %553 = vrot.lane.b32.xlu0 %v458, 1
        %v554 = vpop.permute.xlu0 %553
        %v555 = vadd.f32 %v548, %v552
        %v556 = vadd.f32 %v550, %v554
        %v557 = vmul.f32 %v555, 0.21300554
        %v558 = vmul.f32 %v556, 0.21300554
        %v559 = vadd.f32 %v557, 0.0
        %v560 = vadd.f32 %v558, 0.0
        %561 = vrot.lane.b32.xlu0 %v457, 126
        %v562 = vpop.permute.xlu0 %561
        %563 = vrot.lane.b32.xlu0 %v458, 126
        %v564 = vpop.permute.xlu0 %563
        %565 = vrot.lane.b32.xlu0 %v457, 2
        %v566 = vpop.permute.xlu0 %565
        %567 = vrot.lane.b32.xlu0 %v458, 2
        %v568 = vpop.permute.xlu0 %567
        %v569 = vadd.f32 %v562, %v566
        %v570 = vadd.f32 %v564, %v568
        %v571 = vmul.f32 %v569, 0.10936069
        %v572 = vmul.f32 %v570, 0.10936069
        %v573 = vadd.f32 %v545, %v571
        %v574 = vadd.f32 %v546, %v572
        %575 = vrot.lane.b32.xlu0 %v457, 125
        %v576 = vpop.permute.xlu0 %575
        %577 = vrot.lane.b32.xlu0 %v458, 125
        %v578 = vpop.permute.xlu0 %577
        %579 = vrot.lane.b32.xlu0 %v457, 3
        %v580 = vpop.permute.xlu0 %579
        %581 = vrot.lane.b32.xlu0 %v458, 3
        %v582 = vpop.permute.xlu0 %581
        %v583 = vadd.f32 %v576, %v580
        %v584 = vadd.f32 %v578, %v582
        %v585 = vmul.f32 %v583, 0.036000773
        %v586 = vmul.f32 %v584, 0.036000773
        %v587 = vadd.f32 %v559, %v585
        %v588 = vadd.f32 %v560, %v586
        %589 = vrot.lane.b32.xlu0 %v457, 124
        %v590 = vpop.permute.xlu0 %589
        %591 = vrot.lane.b32.xlu0 %v458, 124
        %v592 = vpop.permute.xlu0 %591
        %593 = vrot.lane.b32.xlu0 %v457, 4
        %v594 = vpop.permute.xlu0 %593
        %595 = vrot.lane.b32.xlu0 %v458, 4
        %v596 = vpop.permute.xlu0 %595
        %v597 = vadd.f32 %v590, %v594
        %v598 = vadd.f32 %v592, %v596
        %v599 = vmul.f32 %v597, 0.007598758
        %v600 = vmul.f32 %v598, 0.007598758
        %v601 = vadd.f32 %v573, %v599
        %v602 = vadd.f32 %v574, %v600
        %603 = vrot.lane.b32.xlu0 %v457, 123
        %v604 = vpop.permute.xlu0 %603
        %605 = vrot.lane.b32.xlu0 %v458, 123
        %v606 = vpop.permute.xlu0 %605
        %607 = vrot.lane.b32.xlu0 %v457, 5
        %v608 = vpop.permute.xlu0 %607
        %609 = vrot.lane.b32.xlu0 %v458, 5
        %v610 = vpop.permute.xlu0 %609
        %v611 = vadd.f32 %v604, %v608
        %v612 = vadd.f32 %v606, %v610
        %v613 = vmul.f32 %v611, 0.0010283801
        %v614 = vmul.f32 %v612, 0.0010283801
        %v615 = vadd.f32 %v587, %v613
        %v616 = vadd.f32 %v588, %v614
        %v617 = vadd.f32 %v601, %v615
        %v618 = vadd.f32 %v602, %v616
        %v619 = vmul.f32 %v461, 0.26601171
        %v620 = vmul.f32 %v462, 0.26601171
        %621 = vrot.lane.b32.xlu0 %v461, 127
        %v622 = vpop.permute.xlu0 %621
        %623 = vrot.lane.b32.xlu0 %v462, 127
        %v624 = vpop.permute.xlu0 %623
        %625 = vrot.lane.b32.xlu0 %v461, 1
        %v626 = vpop.permute.xlu0 %625
        %627 = vrot.lane.b32.xlu0 %v462, 1
        %v628 = vpop.permute.xlu0 %627
        %v629 = vadd.f32 %v622, %v626
        %v630 = vadd.f32 %v624, %v628
        %v631 = vmul.f32 %v629, 0.21300554
        %v632 = vmul.f32 %v630, 0.21300554
        %v633 = vadd.f32 %v631, 0.0
        %v634 = vadd.f32 %v632, 0.0
        %635 = vrot.lane.b32.xlu0 %v461, 126
        %v636 = vpop.permute.xlu0 %635
        %637 = vrot.lane.b32.xlu0 %v462, 126
        %v638 = vpop.permute.xlu0 %637
        %639 = vrot.lane.b32.xlu0 %v461, 2
        %v640 = vpop.permute.xlu0 %639
        %641 = vrot.lane.b32.xlu0 %v462, 2
        %v642 = vpop.permute.xlu0 %641
        %v643 = vadd.f32 %v636, %v640
        %v644 = vadd.f32 %v638, %v642
        %v645 = vmul.f32 %v643, 0.10936069
        %v646 = vmul.f32 %v644, 0.10936069
        %v647 = vadd.f32 %v619, %v645
        %v648 = vadd.f32 %v620, %v646
        %649 = vrot.lane.b32.xlu0 %v461, 125
        %v650 = vpop.permute.xlu0 %649
        %651 = vrot.lane.b32.xlu0 %v462, 125
        %v652 = vpop.permute.xlu0 %651
        %653 = vrot.lane.b32.xlu0 %v461, 3
        %v654 = vpop.permute.xlu0 %653
        %655 = vrot.lane.b32.xlu0 %v462, 3
        %v656 = vpop.permute.xlu0 %655
        %v657 = vadd.f32 %v650, %v654
        %v658 = vadd.f32 %v652, %v656
        %v659 = vmul.f32 %v657, 0.036000773
        %v660 = vmul.f32 %v658, 0.036000773
        %v661 = vadd.f32 %v633, %v659
        %v662 = vadd.f32 %v634, %v660
        %663 = vrot.lane.b32.xlu0 %v461, 124
        %v664 = vpop.permute.xlu0 %663
        %665 = vrot.lane.b32.xlu0 %v462, 124
        %v666 = vpop.permute.xlu0 %665
        %667 = vrot.lane.b32.xlu0 %v461, 4
        %v668 = vpop.permute.xlu0 %667
        %669 = vrot.lane.b32.xlu0 %v462, 4
        %v670 = vpop.permute.xlu0 %669
        %v671 = vadd.f32 %v664, %v668
        %v672 = vadd.f32 %v666, %v670
        %v673 = vmul.f32 %v671, 0.007598758
        %v674 = vmul.f32 %v672, 0.007598758
        %v675 = vadd.f32 %v647, %v673
        %v676 = vadd.f32 %v648, %v674
        %677 = vrot.lane.b32.xlu0 %v461, 123
        %v678 = vpop.permute.xlu0 %677
        %679 = vrot.lane.b32.xlu0 %v462, 123
        %v680 = vpop.permute.xlu0 %679
        %681 = vrot.lane.b32.xlu0 %v461, 5
        %v682 = vpop.permute.xlu0 %681
        %683 = vrot.lane.b32.xlu0 %v462, 5
        %v684 = vpop.permute.xlu0 %683
        %v685 = vadd.f32 %v678, %v682
        %v686 = vadd.f32 %v680, %v684
        %v687 = vmul.f32 %v685, 0.0010283801
        %v688 = vmul.f32 %v686, 0.0010283801
        %v689 = vadd.f32 %v661, %v687
        %v690 = vadd.f32 %v662, %v688
        %v691 = vadd.f32 %v675, %v689
        %v692 = vadd.f32 %v676, %v690
        %v693 = vmul.f32 %v465, 0.26601171
        %v694 = vmul.f32 %v466, 0.26601171
        %695 = vrot.lane.b32.xlu0 %v465, 127
        %v696 = vpop.permute.xlu0 %695
        %697 = vrot.lane.b32.xlu0 %v466, 127
        %v698 = vpop.permute.xlu0 %697
        %699 = vrot.lane.b32.xlu0 %v465, 1
        %v700 = vpop.permute.xlu0 %699
        %701 = vrot.lane.b32.xlu0 %v466, 1
        %v702 = vpop.permute.xlu0 %701
        %v703 = vadd.f32 %v696, %v700
        %v704 = vadd.f32 %v698, %v702
        %v705 = vmul.f32 %v703, 0.21300554
        %v706 = vmul.f32 %v704, 0.21300554
        %v707 = vadd.f32 %v705, 0.0
        %v708 = vadd.f32 %v706, 0.0
        %709 = vrot.lane.b32.xlu0 %v465, 126
        %v710 = vpop.permute.xlu0 %709
        %711 = vrot.lane.b32.xlu0 %v466, 126
        %v712 = vpop.permute.xlu0 %711
        %713 = vrot.lane.b32.xlu0 %v465, 2
        %v714 = vpop.permute.xlu0 %713
        %715 = vrot.lane.b32.xlu0 %v466, 2
        %v716 = vpop.permute.xlu0 %715
        %v717 = vadd.f32 %v710, %v714
        %v718 = vadd.f32 %v712, %v716
        %v719 = vmul.f32 %v717, 0.10936069
        %v720 = vmul.f32 %v718, 0.10936069
        %v721 = vadd.f32 %v693, %v719
        %v722 = vadd.f32 %v694, %v720
        %723 = vrot.lane.b32.xlu0 %v465, 125
        %v724 = vpop.permute.xlu0 %723
        %725 = vrot.lane.b32.xlu0 %v466, 125
        %v726 = vpop.permute.xlu0 %725
        %727 = vrot.lane.b32.xlu0 %v465, 3
        %v728 = vpop.permute.xlu0 %727
        %729 = vrot.lane.b32.xlu0 %v466, 3
        %v730 = vpop.permute.xlu0 %729
        %v731 = vadd.f32 %v724, %v728
        %v732 = vadd.f32 %v726, %v730
        %v733 = vmul.f32 %v731, 0.036000773
        %v734 = vmul.f32 %v732, 0.036000773
        %v735 = vadd.f32 %v707, %v733
        %v736 = vadd.f32 %v708, %v734
        %737 = vrot.lane.b32.xlu0 %v465, 124
        %v738 = vpop.permute.xlu0 %737
        %739 = vrot.lane.b32.xlu0 %v466, 124
        %v740 = vpop.permute.xlu0 %739
        %741 = vrot.lane.b32.xlu0 %v465, 4
        %v742 = vpop.permute.xlu0 %741
        %743 = vrot.lane.b32.xlu0 %v466, 4
        %v744 = vpop.permute.xlu0 %743
        %v745 = vadd.f32 %v738, %v742
        %v746 = vadd.f32 %v740, %v744
        %v747 = vmul.f32 %v745, 0.007598758
        %v748 = vmul.f32 %v746, 0.007598758
        %v749 = vadd.f32 %v721, %v747
        %v750 = vadd.f32 %v722, %v748
        %751 = vrot.lane.b32.xlu0 %v465, 123
        %v752 = vpop.permute.xlu0 %751
        %753 = vrot.lane.b32.xlu0 %v466, 123
        %v754 = vpop.permute.xlu0 %753
        %755 = vrot.lane.b32.xlu0 %v465, 5
        %v756 = vpop.permute.xlu0 %755
        %757 = vrot.lane.b32.xlu0 %v466, 5
        %v758 = vpop.permute.xlu0 %757
        %v759 = vadd.f32 %v752, %v756
        %v760 = vadd.f32 %v754, %v758
        %v761 = vmul.f32 %v759, 0.0010283801
        %v762 = vmul.f32 %v760, 0.0010283801
        %v763 = vadd.f32 %v735, %v761
        %v764 = vadd.f32 %v736, %v762
        %v765 = vadd.f32 %v749, %v763
        %v766 = vadd.f32 %v750, %v764
        %v767 = vmul.f32 %v469, 0.26601171
        %v768 = vmul.f32 %v470, 0.26601171
        %769 = vrot.lane.b32.xlu0 %v469, 127
        %v770 = vpop.permute.xlu0 %769
        %771 = vrot.lane.b32.xlu0 %v470, 127
        %v772 = vpop.permute.xlu0 %771
        %773 = vrot.lane.b32.xlu0 %v469, 1
        %v774 = vpop.permute.xlu0 %773
        %775 = vrot.lane.b32.xlu0 %v470, 1
        %v776 = vpop.permute.xlu0 %775
        %v777 = vadd.f32 %v770, %v774
        %v778 = vadd.f32 %v772, %v776
        %v779 = vmul.f32 %v777, 0.21300554
        %v780 = vmul.f32 %v778, 0.21300554
        %v781 = vadd.f32 %v779, 0.0
        %v782 = vadd.f32 %v780, 0.0
        %783 = vrot.lane.b32.xlu0 %v469, 126
        %v784 = vpop.permute.xlu0 %783
        %785 = vrot.lane.b32.xlu0 %v470, 126
        %v786 = vpop.permute.xlu0 %785
        %787 = vrot.lane.b32.xlu0 %v469, 2
        %v788 = vpop.permute.xlu0 %787
        %789 = vrot.lane.b32.xlu0 %v470, 2
        %v790 = vpop.permute.xlu0 %789
        %v791 = vadd.f32 %v784, %v788
        %v792 = vadd.f32 %v786, %v790
        %v793 = vmul.f32 %v791, 0.10936069
        %v794 = vmul.f32 %v792, 0.10936069
        %v795 = vadd.f32 %v767, %v793
        %v796 = vadd.f32 %v768, %v794
        %797 = vrot.lane.b32.xlu0 %v469, 125
        %v798 = vpop.permute.xlu0 %797
        %799 = vrot.lane.b32.xlu0 %v470, 125
        %v800 = vpop.permute.xlu0 %799
        %801 = vrot.lane.b32.xlu0 %v469, 3
        %v802 = vpop.permute.xlu0 %801
        %803 = vrot.lane.b32.xlu0 %v470, 3
        %v804 = vpop.permute.xlu0 %803
        %v805 = vadd.f32 %v798, %v802
        %v806 = vadd.f32 %v800, %v804
        %v807 = vmul.f32 %v805, 0.036000773
        %v808 = vmul.f32 %v806, 0.036000773
        %v809 = vadd.f32 %v781, %v807
        %v810 = vadd.f32 %v782, %v808
        %811 = vrot.lane.b32.xlu0 %v469, 124
        %v812 = vpop.permute.xlu0 %811
        %813 = vrot.lane.b32.xlu0 %v470, 124
        %v814 = vpop.permute.xlu0 %813
        %815 = vrot.lane.b32.xlu0 %v469, 4
        %v816 = vpop.permute.xlu0 %815
        %817 = vrot.lane.b32.xlu0 %v470, 4
        %v818 = vpop.permute.xlu0 %817
        %v819 = vadd.f32 %v812, %v816
        %v820 = vadd.f32 %v814, %v818
        %v821 = vmul.f32 %v819, 0.007598758
        %v822 = vmul.f32 %v820, 0.007598758
        %v823 = vadd.f32 %v795, %v821
        %v824 = vadd.f32 %v796, %v822
        %825 = vrot.lane.b32.xlu0 %v469, 123
        %v826 = vpop.permute.xlu0 %825
        %827 = vrot.lane.b32.xlu0 %v470, 123
        %v828 = vpop.permute.xlu0 %827
        %829 = vrot.lane.b32.xlu0 %v469, 5
        %v830 = vpop.permute.xlu0 %829
        %831 = vrot.lane.b32.xlu0 %v470, 5
        %v832 = vpop.permute.xlu0 %831
        %v833 = vadd.f32 %v826, %v830
        %v834 = vadd.f32 %v828, %v832
        %v835 = vmul.f32 %v833, 0.0010283801
        %v836 = vmul.f32 %v834, 0.0010283801
        %v837 = vadd.f32 %v809, %v835
        %v838 = vadd.f32 %v810, %v836
        %v839 = vadd.f32 %v823, %v837
        %v840 = vadd.f32 %v824, %v838
        %v841 = vmul.f32 %v543, %v543
        %v842 = vmul.f32 %v544, %v544
        %v843 = vmul.f32 %v617, %v617
        %v844 = vmul.f32 %v618, %v618
        %v845 = vmul.f32 %v543, %v617
        %v846 = vmul.f32 %v544, %v618
        %v847 = vsub.f32 %v691, %v841
        %v848 = vsub.f32 %v692, %v842
        %v849 = vsub.f32 %v765, %v843
        %v850 = vsub.f32 %v766, %v844
        %v851 = vsub.f32 %v839, %v845
        %v852 = vsub.f32 %v840, %v846
        %v853 = vmul.f32 %v845, 2.0
        %v854 = vmul.f32 %v846, 2.0
        %v855 = vadd.f32 %v853, 0.0001
        %v856 = vadd.f32 %v854, 0.0001
        %v857 = vmul.f32 %v851, 2.0
        %v858 = vmul.f32 %v852, 2.0
        %v859 = vadd.f32 %v857, 0.0009
        %v860 = vadd.f32 %v858, 0.0009
        %v861 = vmul.f32 %v855, %v859
        %v862 = vmul.f32 %v856, %v860
        %v863 = vadd.f32 %v841, %v843
        %v864 = vadd.f32 %v842, %v844
        %v865 = vadd.f32 %v863, 0.0001
        %v866 = vadd.f32 %v864, 0.0001
        %v867 = vadd.f32 %v847, %v849
        %v868 = vadd.f32 %v848, %v850
        %v869 = vadd.f32 %v867, 0.0009
        %v870 = vadd.f32 %v868, 0.0009
        %v871 = vmul.f32 %v865, %v869
        %v872 = vmul.f32 %v866, %v870
        %v873 = vrcp.pop %v871
        %v874 = vmul.f32 %v871, %v873
        %v875 = vsub.f32 1.0, %v874
        %v876 = vmul.f32 %v873, %v875
        %v877 = vadd.f32 %v873, %v876
        %vm878 = vweird.f32 %v871
        %vm879 = vweird.f32 %v873
        %vm880 = vmor %vm878, %vm879
        %v881 = vsel %vm880, %v873, %v877
        %v882 = vand.u32 2147483647, %v871
        %vm883 = vcmp.eq.f32.partialorder %v882, 8.507059e+37
        %v884 = vand.u32 %v871, 2147483648
        %v885 = vor.u32 1.1754944e-38, %v884
        %v886 = vsel %vm883, %v885, %v881
        %v887 = vmul.f32 %v861, %v886
        %v888 = vrcp.pop %v872
        %v889 = vmul.f32 %v872, %v888
        %v890 = vsub.f32 1.0, %v889
        %v891 = vmul.f32 %v888, %v890
        %v892 = vadd.f32 %v888, %v891
        %vm893 = vweird.f32 %v872
        %vm894 = vweird.f32 %v888
        %vm895 = vmor %vm893, %vm894
        %v896 = vsel %vm895, %v888, %v892
        %v897 = vand.u32 2147483647, %v872
        %vm898 = vcmp.eq.f32.partialorder %v897, 8.507059e+37
        %v899 = vand.u32 %v872, 2147483648
        %v900 = vor.u32 1.1754944e-38, %v899
        %v901 = vsel %vm898, %v900, %v896
        %v902 = vmul.f32 %v862, %v901
        %v903 = vlaneseq
        %v904 = vshrl.u32 %v903, 7
        %v905 = vadd.s32 %v904, 8
        %s906 = smul.u32 %s27, 16
        %v907 = vstv %s906
        %v908 = vadd.s32 %v904, %v907
        %v909 = vadd.s32 %v905, %v907
        %v910 = vlaneseq
        %v911 = vand.u32 %v910, 127
        %vm912 = vcmp.lt.s32.totalorder %v908, 16
        %vm913 = vcmp.lt.s32.totalorder %v909, 16
        %vm914 = vcmp.ge.s32.totalorder %v911, 8
        %vm915 = vmand %vm912, %vm914
        %vm916 = vmand %vm913, %vm914
        %vm917 = vcmp.lt.s32.totalorder %v911, 24
        %vm918 = vmand %vm915, %vm917
        %vm919 = vmand %vm916, %vm917
        %v920 = vsel %vm918, %v887, 0.0
        %v921 = vsel %vm919, %v902, 0.0
        %v922 = vadd.f32 %v920, %v921
        %v923 = vrot.slane %v922, 4
        %v924 = vadd.f32 %v922, %v923
        %v925 = vrot.slane %v924, 2
        %v926 = vadd.f32 %v924, %v925
        %v927 = vrot.slane %v926, 1
        %v928 = vadd.f32 %v926, %v927
        %929 = vst [vmem:[%s227] sm:$0xff] %v928
        %s930 = sand.u32 %s100, 1
        %s931 = scalar_lea.sflag [#allocation4], %s930
        %s932 = sand.u32 %s100, 1
        %s933 = smul.addr %s932, 8
        %s934 = scalar_lea.vmem [#allocation7], %s933
        // Predicated region
        $region37: #{tpu_custom_call.1} parent=27 // pred_check
          %p935 = pneg %p110
        $region38: #{tpu_custom_call.1} parent=27 // pred_check_branch
          %937 = sbr.rel (%p935) target = $region40
        $region39: #{tpu_custom_call.1} parent=27 // pred_region
          %939 = vsyncadd %s931, 0
          %s940 = sadd.s32 %s27, %s26
          %s941 = smul.addr %s940, 8
          %s942 = scalar_lea.hbm %s2, %s941
          %s944 = sshll.u32 %s934, 4
          %s945 = int_to_ptr.vmem [resolvable:$true] %s944
          %s946 = sshll.u32 %s942, 4
          %s947 = int_to_ptr.hbm [resolvable:$true] %s946
          %949 = dma.vmem_to_hbm [thread:$0]  %s945, 128, %s947, %s931
        $region40: #{tpu_custom_call.1} parent=27 // pred_fallthru
          _
      $region28: #{tpu_custom_call.1} parent=5 // pred_fallthru
        _
      %p950 = scmp.le.s32.totalorder 2, %s17
      // Predicated region
      $region41: #{tpu_custom_call.1} parent=5 // pred_check
        %p951 = pneg %p950
      $region42: #{tpu_custom_call.1} parent=5 // pred_check_branch
        %953 = sbr.rel (%p951) target = $region44
      $region43: #{tpu_custom_call.1} parent=5 // pred_region
        %s954 = ssub.s32 %s17, 2
        // Predicated region
        $region45: #{tpu_custom_call.1} parent=43 // pred_check
          %p955 = pneg %p116
        $region46: #{tpu_custom_call.1} parent=43 // pred_check_branch
          %957 = sbr.rel (%p955) target = $region48
        $region47: #{tpu_custom_call.1} parent=43 // pred_region
          %s958 = sand.u32 %s101, 1
          %s959 = scalar_lea.sflag [#allocation4], %s958
          %s960 = sand.u32 %s101, 1
          %s961 = smul.addr %s960, 8
          %s962 = scalar_lea.vmem [#allocation7], %s961
          %964 = dma.done %s959, 128
        $region48: #{tpu_custom_call.1} parent=43 // pred_fallthru
          _
      $region44: #{tpu_custom_call.1} parent=5 // pred_fallthru
        _
    $region6: #{tpu_custom_call.1} parent=1 // loop_footer
      %s21 = sadd.s32 1, %s17
    $region7: #{tpu_custom_call.1} parent=1 // loop_footer_branch
      %16 = sbr.rel target = $region3
    $region8: #{tpu_custom_call.1} parent=1 // loop_exit
      _
    %965 = vsyncpa [#allocation3], 1
    %s966 = scalar_lea.sflag [#allocation3], 1
    %967 = vsyncpa %s966, 1
    %968 = vsyncpa [#allocation6], 1
    %s969 = scalar_lea.sflag [#allocation6], 1
    %970 = vsyncpa %s969, 1
    %971 = vsyncpa [#allocation4], 1
    %s972 = scalar_lea.sflag [#allocation4], 1
    %973 = vsyncpa %s972, 1

</llo_original>
